<compile_context>
chip_gen: v6e
topology: v6e:2x2x1
jax: 0.10.0
libtpu: 0.0.40
codegen_flags: <defaults>
</compile_context>

<pallas_src>
import jax
import jax.numpy as jnp
from jax import lax
from jax.experimental import pallas as pl
from jax.experimental.pallas import tpu as pltpu


def _make_kernel(n_crops, n_examples, rb, tau):
    inv_tau = 1.0 / tau
    eps2 = 1e-24  # (F.normalize eps=1e-12)^2, clamp on the sum of squares

    def kernel(*refs):
        t_refs = refs[:n_crops]                    # C x (rb, tk), input dtype
        s_refs = refs[n_crops:2 * n_crops]         # C x (N,  tk), input dtype
        loss_ref = refs[2 * n_crops]               # (rb, 1)  f32  per-row lse-diag
        center_part_ref = refs[2 * n_crops + 1]    # (1, 1, tk) f32 col-sum partial
        scores_acc, tg_acc, sg_acc = refs[2 * n_crops + 2:]

        r = pl.program_id(0)                       # row block (parallel axis)
        k = pl.program_id(1)                       # K tile (reduction axis)
        nk = pl.num_programs(1)

        @pl.when(k == 0)
        def _():
            scores_acc[...] = jnp.zeros_like(scores_acc)
            tg_acc[...] = jnp.zeros_like(tg_acc)
            sg_acc[...] = jnp.zeros_like(sg_acc)

        tk = center_part_ref.shape[-1]
        scores_p = jnp.zeros(scores_acc.shape, jnp.float32)
        tg_p = jnp.zeros(tg_acc.shape, jnp.float32)
        sg_p = jnp.zeros(sg_acc.shape, jnp.float32)
        col_sum = jnp.zeros((1, tk), jnp.float32)

        nt = (((1,), (1,)), ((), ()))  # NT contraction (contract last dims)

        # Static unrolled loop over crops: each crop contributes a K-slab of
        # the (virtual) concatenated (N, C*D) teacher / student matrices.
        # All heavy statistics run on the MXU (operands keep the input dtype,
        # f32 accumulation); only the center column sum touches the VPU.
        for c in range(n_crops):
            t = t_refs[c][...]                     # (rb, tk)
            s = s_refs[c][...]                     # (N,  tk)
            scores_p = scores_p + lax.dot_general(
                t, s, nt, preferred_element_type=jnp.float32)      # (rb, N)
            tg_p = tg_p + lax.dot_general(
                t, t, nt, preferred_element_type=jnp.float32)      # (rb, rb)
            sg_p = sg_p + lax.dot_general(
                s, s, nt, preferred_element_type=jnp.float32)      # (N, N)
            # Teacher column sums for the EMA center (exact f32 accumulation).
            col_sum = col_sum + jnp.sum(t.astype(jnp.float32), axis=0,
                                        keepdims=True)

        scores_acc[...] += scores_p
        tg_acc[...] += tg_p
        sg_acc[...] += sg_p

        # Per-(row block, K tile) partial teacher column sums; combined and
        # EMA-updated (tiny (1, out_dim) op) in the wrapper.
        center_part_ref[...] = col_sum.reshape(center_part_ref.shape)

        @pl.when(k == nk - 1)
        def _():
            n = n_examples
            # Sums of squares = diagonals of the accumulated Gram matrices.
            tg_eye = (lax.broadcasted_iota(jnp.int32, (rb, rb), 0)
                      == lax.broadcasted_iota(jnp.int32, (rb, rb), 1))
            t_ss = jnp.sum(jnp.where(tg_eye, tg_acc[...], 0.0),
                           axis=-1, keepdims=True)                 # (rb, 1)
            sg_eye = (lax.broadcasted_iota(jnp.int32, (n, n), 0)
                      == lax.broadcasted_iota(jnp.int32, (n, n), 1))
            s_ss = jnp.sum(jnp.where(sg_eye, sg_acc[...], 0.0),
                           axis=0, keepdims=True)                  # (1, N)

            # Exact L2 normalization applied post-hoc as row/column scales;
            # 1/tau folded into the teacher-side scale.
            scale_t = lax.rsqrt(jnp.maximum(t_ss, jnp.float32(eps2))) \
                * jnp.float32(inv_tau)                             # (rb, 1)
            scale_s = lax.rsqrt(jnp.maximum(s_ss, jnp.float32(eps2)))  # (1, N)
            scores = scores_acc[...] * scale_t * scale_s           # (rb, N)

            # Diagonal extracted straight from the (scaled) MXU scores.
            row_ids = lax.broadcasted_iota(jnp.int32, (rb, n), 0) + r * rb
            col_ids = lax.broadcasted_iota(jnp.int32, (rb, n), 1)
            diag = jnp.sum(jnp.where(row_ids == col_ids, scores, 0.0),
                           axis=-1, keepdims=True)                 # (rb, 1)

            m = jnp.max(scores, axis=-1, keepdims=True)
            lse = jnp.log(jnp.sum(jnp.exp(scores - m), axis=-1,
                                  keepdims=True)) + m
            loss_ref[...] = lse - diag

    return kernel


def _resolve_row_blocks(n_examples, num_row_blocks):
    """Row-block count: 2 on v7x (2 TensorCores/chip), else 1."""
    if num_row_blocks is None:
        num_row_blocks = 1
        try:
            kind = jax.devices()[0].device_kind.lower()
            if "7" in kind:  # TPU7x / v7x: 2 TCs per chip
                num_row_blocks = 2
        except Exception:
            pass
    if num_row_blocks > 1 and (n_examples % (8 * num_row_blocks) != 0):
        num_row_blocks = 1  # row blocks must keep the sublane (8) alignment
    return num_row_blocks


def _pick_k_tile(out_dim, bytes_per_col, fixed_bytes, budget_bytes):
    """Largest K tile (multiple of 128 dividing out_dim, or the full out_dim)
    whose double-buffered streams + resident scratch fit the VMEM budget."""
    avail = budget_bytes - fixed_bytes
    k_max = max(avail // max(bytes_per_col, 1), 128)
    if out_dim <= k_max:
        return out_dim
    best = 0
    cap = min(k_max, out_dim)
    t = 128
    while t <= cap:
        if out_dim % t == 0:
            best = t
        t += 128
    return best if best > 0 else out_dim


def nce_loss(student_output_ori, teacher_output_ori, center,
             tau=0.07, center_momentum=0.995,
             num_row_blocks=None, max_k_tile=None):
    """Returns (loss, new_center).

    student_output_ori / teacher_output_ori: tuples of (N, out_dim) arrays.
    center: (1, out_dim) buffer.
    """
    teacher_output_ori = tuple(teacher_output_ori)
    student_output_ori = tuple(student_output_ori)
    n_crops = len(teacher_output_ori)
    n_examples, out_dim = teacher_output_ori[0].shape

    num_rb = _resolve_row_blocks(n_examples, num_row_blocks)
    rb = n_examples // num_rb

    t_item = jnp.dtype(teacher_output_ori[0].dtype).itemsize
    s_item = jnp.dtype(student_output_ori[0].dtype).itemsize

    # VMEM budget: double-buffered input streams + center-partial output per
    # column of K, plus resident f32 accumulators.  40 MiB keeps headroom on
    # v7x (64 MiB physical VMEM) as well as v5e/v6e (128 MiB).
    bytes_per_col = 2 * n_crops * (rb * t_item + n_examples * s_item) + 2 * 4
    fixed_bytes = 4 * (rb * n_examples + rb * rb
                       + n_examples * n_examples) + (2 << 20)
    budget_bytes = 40 << 20

    if max_k_tile is not None and out_dim % max_k_tile == 0:
        tk = int(max_k_tile)
    else:
        tk = _pick_k_tile(out_dim, bytes_per_col, fixed_bytes, budget_bytes)
    num_k = out_dim // tk if out_dim % tk == 0 else 1

    est_vmem = fixed_bytes + bytes_per_col * tk
    vmem_limit = int(min(max(est_vmem + (8 << 20), 48 << 20), 98 << 20))

    kernel = _make_kernel(n_crops, n_examples, rb, tau)

    t_spec = pl.BlockSpec((rb, tk), lambda r, k: (r, k))
    s_spec = pl.BlockSpec((n_examples, tk), lambda r, k: (0, k))
    in_specs = [t_spec] * n_crops + [s_spec] * n_crops
    out_specs = (
        pl.BlockSpec((rb, 1), lambda r, k: (r, 0)),        # per-row lse - diag
        pl.BlockSpec((1, 1, tk), lambda r, k: (r, 0, k)),  # center partials
    )
    out_shape = (
        jax.ShapeDtypeStruct((n_examples, 1), jnp.float32),
        jax.ShapeDtypeStruct((num_rb, 1, out_dim), jnp.float32),
    )
    scratch_shapes = [
        pltpu.VMEM((rb, n_examples), jnp.float32),          # scores accum
        pltpu.VMEM((rb, rb), jnp.float32),                  # teacher Gram
        pltpu.VMEM((n_examples, n_examples), jnp.float32),  # student Gram
    ]

    flops = 2 * n_crops * out_dim * (
        n_examples * n_examples                      # scores (all row blocks)
        + n_examples * rb                            # teacher Grams
        + num_rb * n_examples * n_examples)          # student Grams (per core)
    bytes_accessed = (n_crops * n_examples * out_dim * t_item
                      + num_rb * n_crops * n_examples * out_dim * s_item
                      + (num_rb * out_dim + n_examples) * 4)
    cost = pl.CostEstimate(
        flops=int(flops),
        transcendentals=int(n_examples * n_examples + 2 * n_examples),
        bytes_accessed=int(bytes_accessed))

    loss_rows, center_parts = pl.pallas_call(
        kernel,
        out_shape=out_shape,
        grid=(num_rb, num_k),
        in_specs=in_specs,
        out_specs=out_specs,
        scratch_shapes=scratch_shapes,
        compiler_params=pltpu.CompilerParams(
            dimension_semantics=("parallel", "arbitrary"),
            vmem_limit_bytes=vmem_limit),
        cost_estimate=cost,
    )(*teacher_output_ori, *student_output_ori)

    # Tiny wrapper-side combines (O(N) and O(out_dim)).
    loss = jnp.mean(loss_rows)
    batch_center = (jnp.sum(center_parts[:, 0, :], axis=0, keepdims=True)
                    / jnp.float32(n_crops * n_examples))
    new_center = (center.astype(jnp.float32) * jnp.float32(center_momentum)
                  + batch_center * jnp.float32(1.0 - center_momentum))
    return loss, new_center


def _reference(student_output_ori, teacher_output_ori, center,
               tau=0.07, center_momentum=0.995):
    t = jnp.concatenate(teacher_output_ori, axis=1)
    s = jnp.concatenate(student_output_ori, axis=1)
    t = t / jnp.maximum(jnp.linalg.norm(t, axis=-1, keepdims=True), 1e-12)
    s = s / jnp.maximum(jnp.linalg.norm(s, axis=-1, keepdims=True), 1e-12)
    scores = (t @ s.T) / tau
    lse = jax.nn.logsumexp(scores, axis=-1)
    loss = jnp.mean(lse - jnp.diag(scores))
    bc = jnp.mean(jnp.concatenate(teacher_output_ori, axis=0), axis=0,
                  keepdims=True)
    new_center = center * center_momentum + bc * (1 - center_momentum)
    return loss, new_center


if __name__ == "__main__":
    # small shapes: 2 crops, n_examples=16, out_dim=1024 (module default)
    n_examples, out_dim, n_crops = 16, 1024, 2
    key = jax.random.PRNGKey(0)
    keys = jax.random.split(key, 2 * n_crops)

    student_output_ori = tuple(
        jax.random.normal(keys[i], (n_examples, out_dim), dtype=jnp.float32)
        for i in range(n_crops))
    teacher_output_ori = tuple(
        jax.random.normal(keys[n_crops + i], (n_examples, out_dim),
                          dtype=jnp.float32)
        for i in range(n_crops))

    # buffer 'center' initialized to zeros, as in __init__
    center = jnp.zeros((1, out_dim), dtype=jnp.float32)

    ref_loss, ref_center = _reference(student_output_ori, teacher_output_ori,
                                      center)

    # Exercise: (a) auto config, (b) multi-K-tile accumulation path,
    # (c) row-sharded (v7x megacore) path.  All are correct on any TPU; the
    # row-sharded one only pays off on 2-TC chips.
    configs = [
        dict(),
        dict(num_row_blocks=1, max_k_tile=128),
        dict(num_row_blocks=2, max_k_tile=256),
    ]
    for cfg in configs:
        loss, new_center = nce_loss(student_output_ori, teacher_output_ori,
                                    center, **cfg)
        jax.block_until_ready((loss, new_center))
        assert jnp.allclose(loss, ref_loss, atol=1e-4, rtol=1e-4), \
            (cfg, loss, ref_loss)
        assert jnp.allclose(new_center, ref_center, atol=1e-5, rtol=1e-5), cfg

    print("KERNEL_OK")
</pallas_src>

<mosaic_0001>
module attributes {stable_mosaic.version = 11 : i64} {
  func.func @kernel(%arg0: i32, %arg1: i32, %arg2: memref<16x1024xf32, #tpu.memory_space<vmem>>, %arg3: memref<16x1024xf32, #tpu.memory_space<vmem>>, %arg4: memref<16x1024xf32, #tpu.memory_space<vmem>>, %arg5: memref<16x1024xf32, #tpu.memory_space<vmem>>, %arg6: memref<16x1xf32, #tpu.memory_space<vmem>>, %arg7: memref<1x1x1024xf32, #tpu.memory_space<vmem>>, %arg8: memref<16x16xf32, #tpu.memory_space<vmem>>, %arg9: memref<16x16xf32, #tpu.memory_space<vmem>>, %arg10: memref<16x16xf32, #tpu.memory_space<vmem>>) attributes {dimension_semantics = [#tpu.dimension_semantics<parallel>, #tpu.dimension_semantics<arbitrary>], iteration_bounds = array<i64: 1, 1>, scalar_prefetch = 0 : i64, scratch_operands = 3 : i64, tpu.core_type = #tpu.core_type<tc>, window_params = [{transform_indices = @transform_0, window_bounds = array<i64: 16, 1024>}, {transform_indices = @transform_1, window_bounds = array<i64: 16, 1024>}, {transform_indices = @transform_2, window_bounds = array<i64: 16, 1024>}, {transform_indices = @transform_3, window_bounds = array<i64: 16, 1024>}, {transform_indices = @transform_4, window_bounds = array<i64: 16, 1>}, {transform_indices = @transform_5, window_bounds = array<i64: 1, 1, 1024>}]} {
    %c0_i32 = arith.constant 0 : i32
    %0 = arith.cmpi eq, %arg1, %c0_i32 : i32
    %1 = arith.extui %0 : i1 to i32
    %c0_i32_0 = arith.constant 0 : i32
    %2 = arith.cmpi ne, %1, %c0_i32_0 : i32
    scf.if %2 {
      %cst_36 = arith.constant 0.000000e+00 : f32
      %43 = vector.broadcast %cst_36 : f32 to vector<16x16xf32>
      %c0_37 = arith.constant 0 : index
      %c0_38 = arith.constant 0 : index
      %44 = vector.load %arg8[%c0_37, %c0_38] : memref<16x16xf32, #tpu.memory_space<vmem>>, vector<16x16xf32>
      tpu.vector_store %arg8[%c0_37, %c0_38], %43 {strides = array<i32>} : memref<16x16xf32, #tpu.memory_space<vmem>>, vector<16x16xf32>,
      %cst_39 = arith.constant 0.000000e+00 : f32
      %45 = vector.broadcast %cst_39 : f32 to vector<16x16xf32>
      %c0_40 = arith.constant 0 : index
      %c0_41 = arith.constant 0 : index
      %46 = vector.load %arg9[%c0_40, %c0_41] : memref<16x16xf32, #tpu.memory_space<vmem>>, vector<16x16xf32>
      tpu.vector_store %arg9[%c0_40, %c0_41], %45 {strides = array<i32>} : memref<16x16xf32, #tpu.memory_space<vmem>>, vector<16x16xf32>,
      %cst_42 = arith.constant 0.000000e+00 : f32
      %47 = vector.broadcast %cst_42 : f32 to vector<16x16xf32>
      %c0_43 = arith.constant 0 : index
      %c0_44 = arith.constant 0 : index
      %48 = vector.load %arg10[%c0_43, %c0_44] : memref<16x16xf32, #tpu.memory_space<vmem>>, vector<16x16xf32>
      tpu.vector_store %arg10[%c0_43, %c0_44], %47 {strides = array<i32>} : memref<16x16xf32, #tpu.memory_space<vmem>>, vector<16x16xf32>,
    } else {
    }
    %cst = arith.constant 0.000000e+00 : f32
    %3 = vector.broadcast %cst : f32 to vector<16x16xf32>
    %cst_1 = arith.constant 0.000000e+00 : f32
    %4 = vector.broadcast %cst_1 : f32 to vector<16x16xf32>
    %cst_2 = arith.constant 0.000000e+00 : f32
    %5 = vector.broadcast %cst_2 : f32 to vector<16x16xf32>
    %cst_3 = arith.constant 0.000000e+00 : f32
    %6 = vector.broadcast %cst_3 : f32 to vector<1x1024xf32>
    %c0 = arith.constant 0 : index
    %c0_4 = arith.constant 0 : index
    %7 = vector.load %arg2[%c0, %c0_4] : memref<16x1024xf32, #tpu.memory_space<vmem>>, vector<16x1024xf32>
    %c0_5 = arith.constant 0 : index
    %c0_6 = arith.constant 0 : index
    %8 = vector.load %arg4[%c0_5, %c0_6] : memref<16x1024xf32, #tpu.memory_space<vmem>>, vector<16x1024xf32>
    %cst_7 = arith.constant dense<0.000000e+00> : vector<16x16xf32>
    %9 = tpu.matmul %7, %8, %cst_7 {dimension_numbers = #tpu.dot_dimension_numbers<[1], [1], [0], [0], [0, 0, 1, 0], [], []>} : vector<16x1024xf32>, vector<16x1024xf32>, vector<16x16xf32> -> vector<16x16xf32>
    %10 = arith.addf %3, %9 : vector<16x16xf32>
    %cst_8 = arith.constant dense<0.000000e+00> : vector<16x16xf32>
    %11 = tpu.matmul %7, %7, %cst_8 {dimension_numbers = #tpu.dot_dimension_numbers<[1], [1], [0], [0], [0, 0, 1, 0], [], []>} : vector<16x1024xf32>, vector<16x1024xf32>, vector<16x16xf32> -> vector<16x16xf32>
    %12 = arith.addf %4, %11 : vector<16x16xf32>
    %cst_9 = arith.constant dense<0.000000e+00> : vector<16x16xf32>
    %13 = tpu.matmul %8, %8, %cst_9 {dimension_numbers = #tpu.dot_dimension_numbers<[1], [1], [0], [0], [0, 0, 1, 0], [], []>} : vector<16x1024xf32>, vector<16x1024xf32>, vector<16x16xf32> -> vector<16x16xf32>
    %14 = arith.addf %5, %13 : vector<16x16xf32>
    %cst_10 = arith.constant dense<0.000000e+00> : vector<1024xf32>
    %15 = vector.multi_reduction <add>, %7, %cst_10 [0] : vector<16x1024xf32> to vector<1024xf32>
    %16 = vector.shape_cast %15 : vector<1024xf32> to vector<1x1024xf32>
    %17 = arith.addf %6, %16 : vector<1x1024xf32>
    %c0_11 = arith.constant 0 : index
    %c0_12 = arith.constant 0 : index
    %18 = vector.load %arg3[%c0_11, %c0_12] : memref<16x1024xf32, #tpu.memory_space<vmem>>, vector<16x1024xf32>
    %c0_13 = arith.constant 0 : index
    %c0_14 = arith.constant 0 : index
    %19 = vector.load %arg5[%c0_13, %c0_14] : memref<16x1024xf32, #tpu.memory_space<vmem>>, vector<16x1024xf32>
    %cst_15 = arith.constant dense<0.000000e+00> : vector<16x16xf32>
    %20 = tpu.matmul %18, %19, %cst_15 {dimension_numbers = #tpu.dot_dimension_numbers<[1], [1], [0], [0], [0, 0, 1, 0], [], []>} : vector<16x1024xf32>, vector<16x1024xf32>, vector<16x16xf32> -> vector<16x16xf32>
    %21 = arith.addf %10, %20 : vector<16x16xf32>
    %cst_16 = arith.constant dense<0.000000e+00> : vector<16x16xf32>
    %22 = tpu.matmul %18, %18, %cst_16 {dimension_numbers = #tpu.dot_dimension_numbers<[1], [1], [0], [0], [0, 0, 1, 0], [], []>} : vector<16x1024xf32>, vector<16x1024xf32>, vector<16x16xf32> -> vector<16x16xf32>
    %23 = arith.addf %12, %22 : vector<16x16xf32>
    %cst_17 = arith.constant dense<0.000000e+00> : vector<16x16xf32>
    %24 = tpu.matmul %19, %19, %cst_17 {dimension_numbers = #tpu.dot_dimension_numbers<[1], [1], [0], [0], [0, 0, 1, 0], [], []>} : vector<16x1024xf32>, vector<16x1024xf32>, vector<16x16xf32> -> vector<16x16xf32>
    %25 = arith.addf %14, %24 : vector<16x16xf32>
    %cst_18 = arith.constant dense<0.000000e+00> : vector<1024xf32>
    %26 = vector.multi_reduction <add>, %18, %cst_18 [0] : vector<16x1024xf32> to vector<1024xf32>
    %27 = vector.shape_cast %26 : vector<1024xf32> to vector<1x1024xf32>
    %28 = arith.addf %17, %27 : vector<1x1024xf32>
    %c0_19 = arith.constant 0 : index
    %c0_20 = arith.constant 0 : index
    %29 = vector.load %arg8[%c0_19, %c0_20] : memref<16x16xf32, #tpu.memory_space<vmem>>, vector<16x16xf32>
    %30 = arith.addf %29, %21 : vector<16x16xf32>
    %c0_21 = arith.constant 0 : index
    %c0_22 = arith.constant 0 : index
    %31 = vector.load %arg8[%c0_21, %c0_22] : memref<16x16xf32, #tpu.memory_space<vmem>>, vector<16x16xf32>
    tpu.vector_store %arg8[%c0_21, %c0_22], %30 {strides = array<i32>} : memref<16x16xf32, #tpu.memory_space<vmem>>, vector<16x16xf32>,
    %c0_23 = arith.constant 0 : index
    %c0_24 = arith.constant 0 : index
    %32 = vector.load %arg9[%c0_23, %c0_24] : memref<16x16xf32, #tpu.memory_space<vmem>>, vector<16x16xf32>
    %33 = arith.addf %32, %23 : vector<16x16xf32>
    %c0_25 = arith.constant 0 : index
    %c0_26 = arith.constant 0 : index
    %34 = vector.load %arg9[%c0_25, %c0_26] : memref<16x16xf32, #tpu.memory_space<vmem>>, vector<16x16xf32>
    tpu.vector_store %arg9[%c0_25, %c0_26], %33 {strides = array<i32>} : memref<16x16xf32, #tpu.memory_space<vmem>>, vector<16x16xf32>,
    %c0_27 = arith.constant 0 : index
    %c0_28 = arith.constant 0 : index
    %35 = vector.load %arg10[%c0_27, %c0_28] : memref<16x16xf32, #tpu.memory_space<vmem>>, vector<16x16xf32>
    %36 = arith.addf %35, %25 : vector<16x16xf32>
    %c0_29 = arith.constant 0 : index
    %c0_30 = arith.constant 0 : index
    %37 = vector.load %arg10[%c0_29, %c0_30] : memref<16x16xf32, #tpu.memory_space<vmem>>, vector<16x16xf32>
    tpu.vector_store %arg10[%c0_29, %c0_30], %36 {strides = array<i32>} : memref<16x16xf32, #tpu.memory_space<vmem>>, vector<16x16xf32>,
    %38 = vector.shape_cast %28 : vector<1x1024xf32> to vector<1x1x1024xf32>
    %c0_31 = arith.constant 0 : index
    %c0_32 = arith.constant 0 : index
    %c0_33 = arith.constant 0 : index
    %39 = vector.load %arg7[%c0_31, %c0_32, %c0_33] : memref<1x1x1024xf32, #tpu.memory_space<vmem>>, vector<1x1x1024xf32>
    tpu.vector_store %arg7[%c0_31, %c0_32, %c0_33], %38 {strides = array<i32>} : memref<1x1x1024xf32, #tpu.memory_space<vmem>>, vector<1x1x1024xf32>,
    %c0_i32_34 = arith.constant 0 : i32
    %40 = arith.cmpi eq, %arg1, %c0_i32_34 : i32
    %41 = arith.extui %40 : i1 to i32
    %c0_i32_35 = arith.constant 0 : i32
    %42 = arith.cmpi ne, %41, %c0_i32_35 : i32
    scf.if %42 {
      %43 = tpu.iota {dimensions = array<i32: 0>} : vector<16x16xi32>
      %44 = tpu.iota {dimensions = array<i32: 1>} : vector<16x16xi32>
      %45 = arith.cmpi eq, %43, %44 : vector<16x16xi32>
      %c0_36 = arith.constant 0 : index
      %c0_37 = arith.constant 0 : index
      %46 = vector.load %arg9[%c0_36, %c0_37] : memref<16x16xf32, #tpu.memory_space<vmem>>, vector<16x16xf32>
      %cst_38 = arith.constant 0.000000e+00 : f32
      %47 = vector.broadcast %cst_38 : f32 to vector<16x16xf32>
      %48 = arith.select %45, %46, %47 : vector<16x16xi1>, vector<16x16xf32>
      %cst_39 = arith.constant dense<0.000000e+00> : vector<16xf32>
      %49 = vector.multi_reduction <add>, %48, %cst_39 [1] : vector<16x16xf32> to vector<16xf32>
      %50 = vector.shape_cast %49 : vector<16xf32> to vector<16x1xf32>
      %51 = tpu.iota {dimensions = array<i32: 0>} : vector<16x16xi32>
      %52 = tpu.iota {dimensions = array<i32: 1>} : vector<16x16xi32>
      %53 = arith.cmpi eq, %51, %52 : vector<16x16xi32>
      %c0_40 = arith.constant 0 : index
      %c0_41 = arith.constant 0 : index
      %54 = vector.load %arg10[%c0_40, %c0_41] : memref<16x16xf32, #tpu.memory_space<vmem>>, vector<16x16xf32>
      %cst_42 = arith.constant 0.000000e+00 : f32
      %55 = vector.broadcast %cst_42 : f32 to vector<16x16xf32>
      %56 = arith.select %53, %54, %55 : vector<16x16xi1>, vector<16x16xf32>
      %cst_43 = arith.constant dense<0.000000e+00> : vector<16xf32>
      %57 = vector.multi_reduction <add>, %56, %cst_43 [0] : vector<16x16xf32> to vector<16xf32>
      %58 = vector.shape_cast %57 : vector<16xf32> to vector<1x16xf32>
      %cst_44 = arith.constant 1.000000e-24 : f32
      %59 = vector.broadcast %cst_44 : f32 to vector<16x1xf32>
      %60 = arith.maximumf %50, %59 : vector<16x1xf32>
      %61 = math.rsqrt %60 : vector<16x1xf32>
      %cst_45 = arith.constant 14.2857141 : f32
      %62 = vector.broadcast %cst_45 : f32 to vector<16x1xf32>
      %63 = arith.mulf %61, %62 : vector<16x1xf32>
      %cst_46 = arith.constant 1.000000e-24 : f32
      %64 = vector.broadcast %cst_46 : f32 to vector<1x16xf32>
      %65 = arith.maximumf %58, %64 : vector<1x16xf32>
      %66 = math.rsqrt %65 : vector<1x16xf32>
      %c0_47 = arith.constant 0 : index
      %c0_48 = arith.constant 0 : index
      %67 = vector.load %arg8[%c0_47, %c0_48] : memref<16x16xf32, #tpu.memory_space<vmem>>, vector<16x16xf32>
      %68 = vector.broadcast %63 : vector<16x1xf32> to vector<16x16xf32>
      %69 = arith.mulf %67, %68 : vector<16x16xf32>
      %70 = vector.broadcast %66 : vector<1x16xf32> to vector<16x16xf32>
      %71 = arith.mulf %69, %70 : vector<16x16xf32>
      %72 = tpu.iota {dimensions = array<i32: 0>} : vector<16x16xi32>
      %c16_i32 = arith.constant 16 : i32
      %73 = arith.muli %arg0, %c16_i32 : i32
      %74 = vector.broadcast %73 : i32 to vector<16x16xi32>
      %75 = arith.addi %72, %74 : vector<16x16xi32>
      %76 = tpu.iota {dimensions = array<i32: 1>} : vector<16x16xi32>
      %77 = arith.cmpi eq, %75, %76 : vector<16x16xi32>
      %cst_49 = arith.constant 0.000000e+00 : f32
      %78 = vector.broadcast %cst_49 : f32 to vector<16x16xf32>
      %79 = arith.select %77, %71, %78 : vector<16x16xi1>, vector<16x16xf32>
      %cst_50 = arith.constant dense<0.000000e+00> : vector<16xf32>
      %80 = vector.multi_reduction <add>, %79, %cst_50 [1] : vector<16x16xf32> to vector<16xf32>
      %81 = vector.shape_cast %80 : vector<16xf32> to vector<16x1xf32>
      %cst_51 = arith.constant dense<0xFF800000> : vector<16xf32>
      %82 = vector.multi_reduction <maximumf>, %71, %cst_51 [1] : vector<16x16xf32> to vector<16xf32>
      %83 = vector.shape_cast %82 : vector<16xf32> to vector<16x1xf32>
      %84 = vector.broadcast %83 : vector<16x1xf32> to vector<16x16xf32>
      %85 = arith.subf %71, %84 : vector<16x16xf32>
      %86 = math.exp %85 : vector<16x16xf32>
      %cst_52 = arith.constant dense<0.000000e+00> : vector<16xf32>
      %87 = vector.multi_reduction <add>, %86, %cst_52 [1] : vector<16x16xf32> to vector<16xf32>
      %88 = vector.shape_cast %87 : vector<16xf32> to vector<16x1xf32>
      %89 = math.log %88 : vector<16x1xf32>
      %90 = arith.addf %89, %83 : vector<16x1xf32>
      %91 = arith.subf %90, %81 : vector<16x1xf32>
      %c0_53 = arith.constant 0 : index
      %c0_54 = arith.constant 0 : index
      %92 = vector.load %arg6[%c0_53, %c0_54] : memref<16x1xf32, #tpu.memory_space<vmem>>, vector<16x1xf32>
      tpu.vector_store %arg6[%c0_53, %c0_54], %91 {strides = array<i32>} : memref<16x1xf32, #tpu.memory_space<vmem>>, vector<16x1xf32>,
    } else {
    }
    return
  }
  func.func @transform_0(%arg0: i32, %arg1: i32) -> (i32, i32) {
    %c0_i32 = arith.constant 0 : i32
    return %arg0, %arg1 : i32, i32
  }
  func.func @transform_1(%arg0: i32, %arg1: i32) -> (i32, i32) {
    %c0_i32 = arith.constant 0 : i32
    return %arg0, %arg1 : i32, i32
  }
  func.func @transform_2(%arg0: i32, %arg1: i32) -> (i32, i32) {
    %c0_i32 = arith.constant 0 : i32
    %c0_i32_0 = arith.constant 0 : i32
    return %c0_i32, %arg1 : i32, i32
  }
  func.func @transform_3(%arg0: i32, %arg1: i32) -> (i32, i32) {
    %c0_i32 = arith.constant 0 : i32
    %c0_i32_0 = arith.constant 0 : i32
    return %c0_i32, %arg1 : i32, i32
  }
  func.func @transform_4(%arg0: i32, %arg1: i32) -> (i32, i32) {
    %c0_i32 = arith.constant 0 : i32
    %c0_i32_0 = arith.constant 0 : i32
    return %arg0, %c0_i32 : i32, i32
  }
  func.func @transform_5(%arg0: i32, %arg1: i32) -> (i32, i32, i32) {
    %c0_i32 = arith.constant 0 : i32
    %c0_i32_0 = arith.constant 0 : i32
    return %arg0, %c0_i32, %arg1 : i32, i32, i32
  }
}

</mosaic_0001>

<llo_original>
// kernel: tpu_custom_call.1
$region0: #{tpu_custom_call.1}
  #allocation0 [shape = 'u32[]', space=smem, size = 0x4, offset = 0x4, fixed_abs, tag = 'smem constant byte address 0x4 - core index']
  #allocation1 [shape = 'u32[144,128]{1,0:T(1,128)}', space=vmem, size = 0x12000, scoped, tag = 'internal scratch']
  #allocation2 [shape = 'f32[16,16]{1,0:T(8,128)}', space=vmem, size = 0x2000, scoped, tag = 'scratch operand']
  #allocation3 [shape = 'f32[16,16]{1,0:T(8,128)}', space=vmem, size = 0x2000, scoped, tag = 'scratch operand']
  #allocation4 [shape = 'f32[16,16]{1,0:T(8,128)}', space=vmem, size = 0x2000, scoped, tag = 'scratch operand']
  %s0 = inlined_call_operand.hbm [shape: f32[16,1024], index: 0, kind: input, shape index: {}]
  %s1 = inlined_call_operand.hbm [shape: f32[16,1024], index: 1, kind: input, shape index: {}]
  %s2 = inlined_call_operand.hbm [shape: f32[16,1024], index: 2, kind: input, shape index: {}]
  %s3 = inlined_call_operand.hbm [shape: f32[16,1024], index: 3, kind: input, shape index: {}]
  %s4 = inlined_call_operand.vmem [shape: f32[16,1], index: 4, kind: output, shape index: {0}]
  %s5 = inlined_call_operand.hbm [shape: f32[1,1,1024], index: 5, kind: output, shape index: {1}]
  %6 = xla_tuple %s4, %s5
  %s7 = sld [smem:[#allocation0]]
  $region58: #{tpu_custom_call.1} parent=0
    _
  %s9 = ssub.s32 1, %s7
  %s10 = scalar_select 0, %s9, %s7
  $region1: #{tpu_custom_call.1} parent=0
    #allocation5 [shape = 'u8[65536]{0}', space=vmem, size = 0x10000, scoped, tag = 'input window, operand 0, single buffered']
    #allocation6 [shape = 's32[1]{0}', space=sflag, size = 0x4, scoped, tag = 'scoped memory for tpu_custom_call.1']
    #allocation7 [shape = 's32[1]{0}', space=sflag, size = 0x4, scoped, tag = 'scoped memory for tpu_custom_call.1']
    #allocation8 [shape = 'u8[65536]{0}', space=vmem, size = 0x10000, scoped, tag = 'input window, operand 1, single buffered']
    #allocation9 [shape = 's32[1]{0}', space=sflag, size = 0x4, scoped, tag = 'scoped memory for tpu_custom_call.1']
    #allocation10 [shape = 'u8[65536]{0}', space=vmem, size = 0x10000, scoped, tag = 'input window, operand 2, single buffered']
    #allocation11 [shape = 'u8[65536]{0}', space=vmem, size = 0x10000, scoped, tag = 'input window, operand 3, single buffered']
    #allocation12 [shape = 's32[1]{0}', space=sflag, size = 0x4, scoped, tag = 'scoped memory for tpu_custom_call.1']
    #allocation13 [shape = 'u8[4096]{0}', space=vmem, size = 0x1000, scoped, tag = 'output window, operand 1, single buffered']
    %11 = vsyncpa [#allocation6], 0
    %12 = vsyncpa [#allocation9], 0
    %13 = vsyncpa [#allocation12], 0
    %14 = vsyncpa [#allocation7], 0
    // Predicated region
    $region2: #{tpu_custom_call.1} parent=1 // pred_check
      _
    $region3: #{tpu_custom_call.1} parent=1 // pred_check_branch
      %16 = sbr.rel (0) target = $region5
    $region4: #{tpu_custom_call.1} parent=1 // pred_region
      %s18 = ssub.s32 2048, 2048
      %19 = vsyncadd [#allocation6], %s18
      %s20 = sshll.u32 [#allocation5], 4
      %s21 = int_to_ptr.vmem [resolvable:$true] %s20
      %26 = dma.hbm_to_vmem [thread:$0]  %s0, 2048, %s21, [#allocation6], 1024, 1024, 64
    $region5: #{tpu_custom_call.1} parent=1 // pred_fallthru
      _
    // Predicated region
    $region6: #{tpu_custom_call.1} parent=1 // pred_check
      _
    $region7: #{tpu_custom_call.1} parent=1 // pred_check_branch
      %28 = sbr.rel (0) target = $region9
    $region8: #{tpu_custom_call.1} parent=1 // pred_region
      %s30 = ssub.s32 2048, 2048
      %31 = vsyncadd [#allocation9], %s30
      %s32 = sshll.u32 [#allocation8], 4
      %s33 = int_to_ptr.vmem [resolvable:$true] %s32
      %38 = dma.hbm_to_vmem [thread:$0]  %s1, 2048, %s33, [#allocation9], 1024, 1024, 64
    $region9: #{tpu_custom_call.1} parent=1 // pred_fallthru
      _
    // Predicated region
    $region10: #{tpu_custom_call.1} parent=1 // pred_check
      _
    $region11: #{tpu_custom_call.1} parent=1 // pred_check_branch
      %40 = sbr.rel (0) target = $region13
    $region12: #{tpu_custom_call.1} parent=1 // pred_region
      %s42 = ssub.s32 2048, 2048
      %43 = vsyncadd [#allocation9], %s42
      %s44 = sshll.u32 [#allocation10], 4
      %s45 = int_to_ptr.vmem [resolvable:$true] %s44
      %50 = dma.hbm_to_vmem [thread:$0]  %s2, 2048, %s45, [#allocation9], 1024, 1024, 64
    $region13: #{tpu_custom_call.1} parent=1 // pred_fallthru
      _
    // Predicated region
    $region14: #{tpu_custom_call.1} parent=1 // pred_check
      _
    $region15: #{tpu_custom_call.1} parent=1 // pred_check_branch
      %52 = sbr.rel (0) target = $region17
    $region16: #{tpu_custom_call.1} parent=1 // pred_region
      %s54 = ssub.s32 2048, 2048
      %55 = vsyncadd [#allocation12], %s54
      %s56 = sshll.u32 [#allocation11], 4
      %s57 = int_to_ptr.vmem [resolvable:$true] %s56
      %62 = dma.hbm_to_vmem [thread:$0]  %s3, 2048, %s57, [#allocation12], 1024, 1024, 64
    $region17: #{tpu_custom_call.1} parent=1 // pred_fallthru
      _
    // Predicated region
    $region18: #{tpu_custom_call.1} parent=1 // pred_check
      _
    $region19: #{tpu_custom_call.1} parent=1 // pred_check_branch
      %64 = sbr.rel (0) target = $region21
    $region20: #{tpu_custom_call.1} parent=1 // pred_region
      %65 = dma.done [#allocation6], 2048
    $region21: #{tpu_custom_call.1} parent=1 // pred_fallthru
      _
    // Predicated region
    $region22: #{tpu_custom_call.1} parent=1 // pred_check
      _
    $region23: #{tpu_custom_call.1} parent=1 // pred_check_branch
      %67 = sbr.rel (0) target = $region25
    $region24: #{tpu_custom_call.1} parent=1 // pred_region
      %68 = dma.done [#allocation9], 2048
    $region25: #{tpu_custom_call.1} parent=1 // pred_fallthru
      _
    // Predicated region
    $region26: #{tpu_custom_call.1} parent=1 // pred_check
      _
    $region27: #{tpu_custom_call.1} parent=1 // pred_check_branch
      %70 = sbr.rel (0) target = $region29
    $region28: #{tpu_custom_call.1} parent=1 // pred_region
      %71 = dma.done [#allocation9], 2048
    $region29: #{tpu_custom_call.1} parent=1 // pred_fallthru
      _
    // Predicated region
    $region30: #{tpu_custom_call.1} parent=1 // pred_check
      _
    $region31: #{tpu_custom_call.1} parent=1 // pred_check_branch
      %73 = sbr.rel (0) target = $region33
    $region32: #{tpu_custom_call.1} parent=1 // pred_region
      %74 = dma.done [#allocation12], 2048
    $region33: #{tpu_custom_call.1} parent=1 // pred_fallthru
      _
    %p75 = scmp.eq.s32.totalorder 0, 0
    // Predicated region
    $region34: #{tpu_custom_call.1} parent=1 // pred_check
      %p76 = pneg %p75
    $region35: #{tpu_custom_call.1} parent=1 // pred_check_branch
      %78 = sbr.rel (%p76) target = $region37
    $region36: #{tpu_custom_call.1} parent=1 // pred_region
      %vm79 = vcmask 130048
      %80 = vst.msk [vmem:[#allocation2] sm:$0xff] %vm79, 0.0
      %81 = vst.msk [vmem:[#allocation2 + $0x8] sm:$0xff] %vm79, 0.0
      %82 = vst.msk [vmem:[#allocation3] sm:$0xff] %vm79, 0.0
      %83 = vst.msk [vmem:[#allocation3 + $0x8] sm:$0xff] %vm79, 0.0
      %84 = vst.msk [vmem:[#allocation4] sm:$0xff] %vm79, 0.0
      %85 = vst.msk [vmem:[#allocation4 + $0x8] sm:$0xff] %vm79, 0.0
    $region37: #{tpu_custom_call.1} parent=1 // pred_fallthru
      _
    %v86 = vld [vmem:[#allocation5] sm:$0xff]
    %v87 = vld [vmem:[#allocation5 + $0x8] sm:$0xff]
    %v88 = vld [vmem:[#allocation5 + $0x10] sm:$0xff]
    %v89 = vld [vmem:[#allocation5 + $0x18] sm:$0xff]
    %v90 = vld [vmem:[#allocation5 + $0x20] sm:$0xff]
    %v91 = vld [vmem:[#allocation5 + $0x28] sm:$0xff]
    %v92 = vld [vmem:[#allocation5 + $0x30] sm:$0xff]
    %v93 = vld [vmem:[#allocation5 + $0x38] sm:$0xff]
    %v94 = vld [vmem:[#allocation5 + $0x40] sm:$0xff]
    %v95 = vld [vmem:[#allocation5 + $0x48] sm:$0xff]
    %v96 = vld [vmem:[#allocation5 + $0x50] sm:$0xff]
    %v97 = vld [vmem:[#allocation5 + $0x58] sm:$0xff]
    %v98 = vld [vmem:[#allocation5 + $0x60] sm:$0xff]
    %v99 = vld [vmem:[#allocation5 + $0x68] sm:$0xff]
    %v100 = vld [vmem:[#allocation5 + $0x70] sm:$0xff]
    %v101 = vld [vmem:[#allocation5 + $0x78] sm:$0xff]
    %v102 = vld [vmem:[#allocation10] sm:$0xff]
    %v103 = vld [vmem:[#allocation10 + $0x8] sm:$0xff]
    %v104 = vld [vmem:[#allocation10 + $0x10] sm:$0xff]
    %v105 = vld [vmem:[#allocation10 + $0x18] sm:$0xff]
    %v106 = vld [vmem:[#allocation10 + $0x20] sm:$0xff]
    %v107 = vld [vmem:[#allocation10 + $0x28] sm:$0xff]
    %v108 = vld [vmem:[#allocation10 + $0x30] sm:$0xff]
    %v109 = vld [vmem:[#allocation10 + $0x38] sm:$0xff]
    %v110 = vld [vmem:[#allocation10 + $0x40] sm:$0xff]
    %v111 = vld [vmem:[#allocation10 + $0x48] sm:$0xff]
    %v112 = vld [vmem:[#allocation10 + $0x50] sm:$0xff]
    %v113 = vld [vmem:[#allocation10 + $0x58] sm:$0xff]
    %v114 = vld [vmem:[#allocation10 + $0x60] sm:$0xff]
    %v115 = vld [vmem:[#allocation10 + $0x68] sm:$0xff]
    %v116 = vld [vmem:[#allocation10 + $0x70] sm:$0xff]
    %v117 = vld [vmem:[#allocation10 + $0x78] sm:$0xff]
    %v118 = vadd.f32 %v86, %v94
    %v119 = vrot.slane %v118, 4
    %v120 = vadd.f32 %v118, %v119
    %v121 = vrot.slane %v120, 2
    %v122 = vadd.f32 %v120, %v121
    %v123 = vrot.slane %v122, 1
    %v124 = vadd.f32 %v122, %v123
    %v125 = vadd.f32 %v87, %v95
    %v126 = vrot.slane %v125, 4
    %v127 = vadd.f32 %v125, %v126
    %v128 = vrot.slane %v127, 2
    %v129 = vadd.f32 %v127, %v128
    %v130 = vrot.slane %v129, 1
    %v131 = vadd.f32 %v129, %v130
    %v132 = vadd.f32 %v88, %v96
    %v133 = vrot.slane %v132, 4
    %v134 = vadd.f32 %v132, %v133
    %v135 = vrot.slane %v134, 2
    %v136 = vadd.f32 %v134, %v135
    %v137 = vrot.slane %v136, 1
    %v138 = vadd.f32 %v136, %v137
    %v139 = vadd.f32 %v89, %v97
    %v140 = vrot.slane %v139, 4
    %v141 = vadd.f32 %v139, %v140
    %v142 = vrot.slane %v141, 2
    %v143 = vadd.f32 %v141, %v142
    %v144 = vrot.slane %v143, 1
    %v145 = vadd.f32 %v143, %v144
    %v146 = vadd.f32 %v90, %v98
    %v147 = vrot.slane %v146, 4
    %v148 = vadd.f32 %v146, %v147
    %v149 = vrot.slane %v148, 2
    %v150 = vadd.f32 %v148, %v149
    %v151 = vrot.slane %v150, 1
    %v152 = vadd.f32 %v150, %v151
    %v153 = vadd.f32 %v91, %v99
    %v154 = vrot.slane %v153, 4
    %v155 = vadd.f32 %v153, %v154
    %v156 = vrot.slane %v155, 2
    %v157 = vadd.f32 %v155, %v156
    %v158 = vrot.slane %v157, 1
    %v159 = vadd.f32 %v157, %v158
    %v160 = vadd.f32 %v92, %v100
    %v161 = vrot.slane %v160, 4
    %v162 = vadd.f32 %v160, %v161
    %v163 = vrot.slane %v162, 2
    %v164 = vadd.f32 %v162, %v163
    %v165 = vrot.slane %v164, 1
    %v166 = vadd.f32 %v164, %v165
    %v167 = vadd.f32 %v93, %v101
    %v168 = vrot.slane %v167, 4
    %v169 = vadd.f32 %v167, %v168
    %v170 = vrot.slane %v169, 2
    %v171 = vadd.f32 %v169, %v170
    %v172 = vrot.slane %v171, 1
    %v173 = vadd.f32 %v171, %v172
    %v174 = vadd.f32 %v124, 0.0
    %v175 = vadd.f32 %v131, 0.0
    %v176 = vadd.f32 %v138, 0.0
    %v177 = vadd.f32 %v145, 0.0
    %v178 = vadd.f32 %v152, 0.0
    %v179 = vadd.f32 %v159, 0.0
    %v180 = vadd.f32 %v166, 0.0
    %v181 = vadd.f32 %v173, 0.0
    %v182 = vld [vmem:[#allocation8] sm:$0xff]
    %v183 = vld [vmem:[#allocation8 + $0x8] sm:$0xff]
    %v184 = vld [vmem:[#allocation8 + $0x10] sm:$0xff]
    %v185 = vld [vmem:[#allocation8 + $0x18] sm:$0xff]
    %v186 = vld [vmem:[#allocation8 + $0x20] sm:$0xff]
    %v187 = vld [vmem:[#allocation8 + $0x28] sm:$0xff]
    %v188 = vld [vmem:[#allocation8 + $0x30] sm:$0xff]
    %v189 = vld [vmem:[#allocation8 + $0x38] sm:$0xff]
    %v190 = vld [vmem:[#allocation8 + $0x40] sm:$0xff]
    %v191 = vld [vmem:[#allocation8 + $0x48] sm:$0xff]
    %v192 = vld [vmem:[#allocation8 + $0x50] sm:$0xff]
    %v193 = vld [vmem:[#allocation8 + $0x58] sm:$0xff]
    %v194 = vld [vmem:[#allocation8 + $0x60] sm:$0xff]
    %v195 = vld [vmem:[#allocation8 + $0x68] sm:$0xff]
    %v196 = vld [vmem:[#allocation8 + $0x70] sm:$0xff]
    %v197 = vld [vmem:[#allocation8 + $0x78] sm:$0xff]
    %v198 = vld [vmem:[#allocation11] sm:$0xff]
    %v199 = vld [vmem:[#allocation11 + $0x8] sm:$0xff]
    %v200 = vld [vmem:[#allocation11 + $0x10] sm:$0xff]
    %v201 = vld [vmem:[#allocation11 + $0x18] sm:$0xff]
    %v202 = vld [vmem:[#allocation11 + $0x20] sm:$0xff]
    %v203 = vld [vmem:[#allocation11 + $0x28] sm:$0xff]
    %v204 = vld [vmem:[#allocation11 + $0x30] sm:$0xff]
    %v205 = vld [vmem:[#allocation11 + $0x38] sm:$0xff]
    %v206 = vld [vmem:[#allocation11 + $0x40] sm:$0xff]
    %v207 = vld [vmem:[#allocation11 + $0x48] sm:$0xff]
    %v208 = vld [vmem:[#allocation11 + $0x50] sm:$0xff]
    %v209 = vld [vmem:[#allocation11 + $0x58] sm:$0xff]
    %v210 = vld [vmem:[#allocation11 + $0x60] sm:$0xff]
    %v211 = vld [vmem:[#allocation11 + $0x68] sm:$0xff]
    %v212 = vld [vmem:[#allocation11 + $0x70] sm:$0xff]
    %v213 = vld [vmem:[#allocation11 + $0x78] sm:$0xff]
    %214 = vmatprep.subr.mxu0 0.0
    %215 = vmatpush1.xpose.msra.mxu0 0.0
    %216 = vmatprep.subr.mxu0 0.0
    %217 = vmatpush1.xpose.msra.mxu0 0.0
    %218 = vmatprep.subr.mxu0 0.0
    %219 = vmatpush1.xpose.msra.mxu0 0.0
    %220 = vmatprep.subr.mxu0 0.0
    %221 = vmatpush1.xpose.msra.mxu0 0.0
    %222 = vmatprep.subr.mxu0 0.0
    %223 = vmatpush1.xpose.msra.mxu0 0.0
    %224 = vmatprep.subr.mxu0 0.0
    %225 = vmatpush1.xpose.msra.mxu0 0.0
    %226 = vmatprep.subr.mxu0 0.0
    %227 = vmatpush1.xpose.msra.mxu0 0.0
    %228 = vmatprep.subr.mxu0 0.0
    %229 = vmatpush1.xpose.msra.mxu0 0.0
    %230 = vmatprep.subr.mxu0 0.0
    %231 = vmatpush1.xpose.msra.mxu0 0.0
    %232 = vmatprep.subr.mxu0 0.0
    %233 = vmatpush1.xpose.msra.mxu0 0.0
    %234 = vmatprep.subr.mxu0 0.0
    %235 = vmatpush1.xpose.msra.mxu0 0.0
    %236 = vmatprep.subr.mxu0 0.0
    %237 = vmatpush1.xpose.msra.mxu0 0.0
    %238 = vmatprep.subr.mxu0 0.0
    %239 = vmatpush1.xpose.msra.mxu0 0.0
    %240 = vmatprep.subr.mxu0 0.0
    %241 = vmatpush1.xpose.msra.mxu0 0.0
    %242 = vmatprep.subr.mxu0 %v207
    %243 = vmatpush1.xpose.msra.mxu0 %v206
    %244 = vmatprep.subr.mxu0 %v199
    %245 = vmatpush1.xpose.msra.mxu0 %v198
    %246 = vmatprep.subr.mxu0 0.0
    %247 = vmatpush2.xpose.msra.mxu0 0.0
    %248 = vmatprep.subr.mxu0 0.0
    %249 = vmatpush2.xpose.msra.mxu0 0.0
    %250 = vmatprep.subr.mxu0 0.0
    %251 = vmatpush2.xpose.msra.mxu0 0.0
    %252 = vmatprep.subr.mxu0 0.0
    %253 = vmatpush2.xpose.msra.mxu0 0.0
    %254 = vmatprep.subr.mxu0 0.0
    %255 = vmatpush2.xpose.msra.mxu0 0.0
    %256 = vmatprep.subr.mxu0 0.0
    %257 = vmatpush2.xpose.msra.mxu0 0.0
    %258 = vmatprep.subr.mxu0 0.0
    %259 = vmatpush2.xpose.msra.mxu0 0.0
    %260 = vmatprep.subr.mxu0 0.0
    %261 = vmatpush2.xpose.msra.mxu0 0.0
    %262 = vmatprep.subr.mxu0 0.0
    %263 = vmatpush2.xpose.msra.mxu0 0.0
    %264 = vmatprep.subr.mxu0 0.0
    %265 = vmatpush2.xpose.msra.mxu0 0.0
    %266 = vmatprep.subr.mxu0 0.0
    %267 = vmatpush2.xpose.msra.mxu0 0.0
    %268 = vmatprep.subr.mxu0 0.0
    %269 = vmatpush2.xpose.msra.mxu0 0.0
    %270 = vmatprep.subr.mxu0 0.0
    %271 = vmatpush2.xpose.msra.mxu0 0.0
    %272 = vmatprep.subr.mxu0 0.0
    %273 = vmatpush2.xpose.msra.mxu0 0.0
    %274 = vmatprep.subr.mxu0 0.0
    %275 = vmatpush2.xpose.msra.mxu0 0.0
    %276 = vmatprep.subr.mxu0 0.0
    %277 = vmatpush2.xpose.msra.mxu0 0.0
    %278 = vmatprep.mubr.f32.mxu0 %v183
    %279 = vmatmul.mubr.f32.gmra.mxu0 %v182
    %v280 = vpop.f32.mrf.mxu0
    %v281 = vadd.f32 0.0, %v280
    %v282 = vpop.f32.mrf.mxu0
    %283 = vmatprep.mubr.f32.mxu0 %v191
    %284 = vmatmul.mubr.f32.gmra.mxu0 %v190
    %v285 = vpop.f32.mrf.mxu0
    %v286 = vadd.f32 0.0, %v285
    %v287 = vpop.f32.mrf.mxu0
    %288 = vdwg.mxu0
    %289 = vmatprep.subr.mxu0 0.0
    %290 = vmatpush1.xpose.msra.mxu0 0.0
    %291 = vmatprep.subr.mxu0 0.0
    %292 = vmatpush1.xpose.msra.mxu0 0.0
    %293 = vmatprep.subr.mxu0 0.0
    %294 = vmatpush1.xpose.msra.mxu0 0.0
    %295 = vmatprep.subr.mxu0 0.0
    %296 = vmatpush1.xpose.msra.mxu0 0.0
    %297 = vmatprep.subr.mxu0 0.0
    %298 = vmatpush1.xpose.msra.mxu0 0.0
    %299 = vmatprep.subr.mxu0 0.0
    %300 = vmatpush1.xpose.msra.mxu0 0.0
    %301 = vmatprep.subr.mxu0 0.0
    %302 = vmatpush1.xpose.msra.mxu0 0.0
    %303 = vmatprep.subr.mxu0 0.0
    %304 = vmatpush1.xpose.msra.mxu0 0.0
    %305 = vmatprep.subr.mxu0 0.0
    %306 = vmatpush1.xpose.msra.mxu0 0.0
    %307 = vmatprep.subr.mxu0 0.0
    %308 = vmatpush1.xpose.msra.mxu0 0.0
    %309 = vmatprep.subr.mxu0 0.0
    %310 = vmatpush1.xpose.msra.mxu0 0.0
    %311 = vmatprep.subr.mxu0 0.0
    %312 = vmatpush1.xpose.msra.mxu0 0.0
    %313 = vmatprep.subr.mxu0 0.0
    %314 = vmatpush1.xpose.msra.mxu0 0.0
    %315 = vmatprep.subr.mxu0 0.0
    %316 = vmatpush1.xpose.msra.mxu0 0.0
    %317 = vmatprep.subr.mxu0 %v209
    %318 = vmatpush1.xpose.msra.mxu0 %v208
    %319 = vmatprep.subr.mxu0 %v201
    %320 = vmatpush1.xpose.msra.mxu0 %v200
    %321 = vmatprep.subr.mxu0 0.0
    %322 = vmatpush2.xpose.msra.mxu0 0.0
    %323 = vmatprep.subr.mxu0 0.0
    %324 = vmatpush2.xpose.msra.mxu0 0.0
    %325 = vmatprep.subr.mxu0 0.0
    %326 = vmatpush2.xpose.msra.mxu0 0.0
    %327 = vmatprep.subr.mxu0 0.0
    %328 = vmatpush2.xpose.msra.mxu0 0.0
    %329 = vmatprep.subr.mxu0 0.0
    %330 = vmatpush2.xpose.msra.mxu0 0.0
    %331 = vmatprep.subr.mxu0 0.0
    %332 = vmatpush2.xpose.msra.mxu0 0.0
    %333 = vmatprep.subr.mxu0 0.0
    %334 = vmatpush2.xpose.msra.mxu0 0.0
    %335 = vmatprep.subr.mxu0 0.0
    %336 = vmatpush2.xpose.msra.mxu0 0.0
    %337 = vmatprep.subr.mxu0 0.0
    %338 = vmatpush2.xpose.msra.mxu0 0.0
    %339 = vmatprep.subr.mxu0 0.0
    %340 = vmatpush2.xpose.msra.mxu0 0.0
    %341 = vmatprep.subr.mxu0 0.0
    %342 = vmatpush2.xpose.msra.mxu0 0.0
    %343 = vmatprep.subr.mxu0 0.0
    %344 = vmatpush2.xpose.msra.mxu0 0.0
    %345 = vmatprep.subr.mxu0 0.0
    %346 = vmatpush2.xpose.msra.mxu0 0.0
    %347 = vmatprep.subr.mxu0 0.0
    %348 = vmatpush2.xpose.msra.mxu0 0.0
    %349 = vmatprep.subr.mxu0 0.0
    %350 = vmatpush2.xpose.msra.mxu0 0.0
    %351 = vmatprep.subr.mxu0 0.0
    %352 = vmatpush2.xpose.msra.mxu0 0.0
    %353 = vmatprep.mubr.f32.mxu0 %v185
    %354 = vmatmul.mubr.f32.gmra.mxu0 %v184
    %v355 = vpop.f32.mrf.mxu0
    %v356 = vadd.f32 %v281, %v355
    %v357 = vpop.f32.mrf.mxu0
    %358 = vmatprep.mubr.f32.mxu0 %v193
    %359 = vmatmul.mubr.f32.gmra.mxu0 %v192
    %v360 = vpop.f32.mrf.mxu0
    %v361 = vadd.f32 %v286, %v360
    %v362 = vpop.f32.mrf.mxu0
    %363 = vdwg.mxu0
    %364 = vmatprep.subr.mxu0 0.0
    %365 = vmatpush1.xpose.msra.mxu0 0.0
    %366 = vmatprep.subr.mxu0 0.0
    %367 = vmatpush1.xpose.msra.mxu0 0.0
    %368 = vmatprep.subr.mxu0 0.0
    %369 = vmatpush1.xpose.msra.mxu0 0.0
    %370 = vmatprep.subr.mxu0 0.0
    %371 = vmatpush1.xpose.msra.mxu0 0.0
    %372 = vmatprep.subr.mxu0 0.0
    %373 = vmatpush1.xpose.msra.mxu0 0.0
    %374 = vmatprep.subr.mxu0 0.0
    %375 = vmatpush1.xpose.msra.mxu0 0.0
    %376 = vmatprep.subr.mxu0 0.0
    %377 = vmatpush1.xpose.msra.mxu0 0.0
    %378 = vmatprep.subr.mxu0 0.0
    %379 = vmatpush1.xpose.msra.mxu0 0.0
    %380 = vmatprep.subr.mxu0 0.0
    %381 = vmatpush1.xpose.msra.mxu0 0.0
    %382 = vmatprep.subr.mxu0 0.0
    %383 = vmatpush1.xpose.msra.mxu0 0.0
    %384 = vmatprep.subr.mxu0 0.0
    %385 = vmatpush1.xpose.msra.mxu0 0.0
    %386 = vmatprep.subr.mxu0 0.0
    %387 = vmatpush1.xpose.msra.mxu0 0.0
    %388 = vmatprep.subr.mxu0 0.0
    %389 = vmatpush1.xpose.msra.mxu0 0.0
    %390 = vmatprep.subr.mxu0 0.0
    %391 = vmatpush1.xpose.msra.mxu0 0.0
    %392 = vmatprep.subr.mxu0 %v211
    %393 = vmatpush1.xpose.msra.mxu0 %v210
    %394 = vmatprep.subr.mxu0 %v203
    %395 = vmatpush1.xpose.msra.mxu0 %v202
    %396 = vmatprep.subr.mxu0 0.0
    %397 = vmatpush2.xpose.msra.mxu0 0.0
    %398 = vmatprep.subr.mxu0 0.0
    %399 = vmatpush2.xpose.msra.mxu0 0.0
    %400 = vmatprep.subr.mxu0 0.0
    %401 = vmatpush2.xpose.msra.mxu0 0.0
    %402 = vmatprep.subr.mxu0 0.0
    %403 = vmatpush2.xpose.msra.mxu0 0.0
    %404 = vmatprep.subr.mxu0 0.0
    %405 = vmatpush2.xpose.msra.mxu0 0.0
    %406 = vmatprep.subr.mxu0 0.0
    %407 = vmatpush2.xpose.msra.mxu0 0.0
    %408 = vmatprep.subr.mxu0 0.0
    %409 = vmatpush2.xpose.msra.mxu0 0.0
    %410 = vmatprep.subr.mxu0 0.0
    %411 = vmatpush2.xpose.msra.mxu0 0.0
    %412 = vmatprep.subr.mxu0 0.0
    %413 = vmatpush2.xpose.msra.mxu0 0.0
    %414 = vmatprep.subr.mxu0 0.0
    %415 = vmatpush2.xpose.msra.mxu0 0.0
    %416 = vmatprep.subr.mxu0 0.0
    %417 = vmatpush2.xpose.msra.mxu0 0.0
    %418 = vmatprep.subr.mxu0 0.0
    %419 = vmatpush2.xpose.msra.mxu0 0.0
    %420 = vmatprep.subr.mxu0 0.0
    %421 = vmatpush2.xpose.msra.mxu0 0.0
    %422 = vmatprep.subr.mxu0 0.0
    %423 = vmatpush2.xpose.msra.mxu0 0.0
    %424 = vmatprep.subr.mxu0 0.0
    %425 = vmatpush2.xpose.msra.mxu0 0.0
    %426 = vmatprep.subr.mxu0 0.0
    %427 = vmatpush2.xpose.msra.mxu0 0.0
    %428 = vmatprep.mubr.f32.mxu0 %v187
    %429 = vmatmul.mubr.f32.gmra.mxu0 %v186
    %v430 = vpop.f32.mrf.mxu0
    %v431 = vadd.f32 %v356, %v430
    %v432 = vpop.f32.mrf.mxu0
    %433 = vmatprep.mubr.f32.mxu0 %v195
    %434 = vmatmul.mubr.f32.gmra.mxu0 %v194
    %v435 = vpop.f32.mrf.mxu0
    %v436 = vadd.f32 %v361, %v435
    %v437 = vpop.f32.mrf.mxu0
    %438 = vdwg.mxu0
    %439 = vmatprep.subr.mxu0 0.0
    %440 = vmatpush1.xpose.msra.mxu0 0.0
    %441 = vmatprep.subr.mxu0 0.0
    %442 = vmatpush1.xpose.msra.mxu0 0.0
    %443 = vmatprep.subr.mxu0 0.0
    %444 = vmatpush1.xpose.msra.mxu0 0.0
    %445 = vmatprep.subr.mxu0 0.0
    %446 = vmatpush1.xpose.msra.mxu0 0.0
    %447 = vmatprep.subr.mxu0 0.0
    %448 = vmatpush1.xpose.msra.mxu0 0.0
    %449 = vmatprep.subr.mxu0 0.0
    %450 = vmatpush1.xpose.msra.mxu0 0.0
    %451 = vmatprep.subr.mxu0 0.0
    %452 = vmatpush1.xpose.msra.mxu0 0.0
    %453 = vmatprep.subr.mxu0 0.0
    %454 = vmatpush1.xpose.msra.mxu0 0.0
    %455 = vmatprep.subr.mxu0 0.0
    %456 = vmatpush1.xpose.msra.mxu0 0.0
    %457 = vmatprep.subr.mxu0 0.0
    %458 = vmatpush1.xpose.msra.mxu0 0.0
    %459 = vmatprep.subr.mxu0 0.0
    %460 = vmatpush1.xpose.msra.mxu0 0.0
    %461 = vmatprep.subr.mxu0 0.0
    %462 = vmatpush1.xpose.msra.mxu0 0.0
    %463 = vmatprep.subr.mxu0 0.0
    %464 = vmatpush1.xpose.msra.mxu0 0.0
    %465 = vmatprep.subr.mxu0 0.0
    %466 = vmatpush1.xpose.msra.mxu0 0.0
    %467 = vmatprep.subr.mxu0 %v213
    %468 = vmatpush1.xpose.msra.mxu0 %v212
    %469 = vmatprep.subr.mxu0 %v205
    %470 = vmatpush1.xpose.msra.mxu0 %v204
    %471 = vmatprep.subr.mxu0 0.0
    %472 = vmatpush2.xpose.msra.mxu0 0.0
    %473 = vmatprep.subr.mxu0 0.0
    %474 = vmatpush2.xpose.msra.mxu0 0.0
    %475 = vmatprep.subr.mxu0 0.0
    %476 = vmatpush2.xpose.msra.mxu0 0.0
    %477 = vmatprep.subr.mxu0 0.0
    %478 = vmatpush2.xpose.msra.mxu0 0.0
    %479 = vmatprep.subr.mxu0 0.0
    %480 = vmatpush2.xpose.msra.mxu0 0.0
    %481 = vmatprep.subr.mxu0 0.0
    %482 = vmatpush2.xpose.msra.mxu0 0.0
    %483 = vmatprep.subr.mxu0 0.0
    %484 = vmatpush2.xpose.msra.mxu0 0.0
    %485 = vmatprep.subr.mxu0 0.0
    %486 = vmatpush2.xpose.msra.mxu0 0.0
    %487 = vmatprep.subr.mxu0 0.0
    %488 = vmatpush2.xpose.msra.mxu0 0.0
    %489 = vmatprep.subr.mxu0 0.0
    %490 = vmatpush2.xpose.msra.mxu0 0.0
    %491 = vmatprep.subr.mxu0 0.0
    %492 = vmatpush2.xpose.msra.mxu0 0.0
    %493 = vmatprep.subr.mxu0 0.0
    %494 = vmatpush2.xpose.msra.mxu0 0.0
    %495 = vmatprep.subr.mxu0 0.0
    %496 = vmatpush2.xpose.msra.mxu0 0.0
    %497 = vmatprep.subr.mxu0 0.0
    %498 = vmatpush2.xpose.msra.mxu0 0.0
    %499 = vmatprep.subr.mxu0 0.0
    %500 = vmatpush2.xpose.msra.mxu0 0.0
    %501 = vmatprep.subr.mxu0 0.0
    %502 = vmatpush2.xpose.msra.mxu0 0.0
    %503 = vmatprep.mubr.f32.mxu0 %v189
    %504 = vmatmul.mubr.f32.gmra.mxu0 %v188
    %v505 = vpop.f32.mrf.mxu0
    %v506 = vadd.f32 %v431, %v505
    %v507 = vpop.f32.mrf.mxu0
    %508 = vmatprep.mubr.f32.mxu0 %v197
    %509 = vmatmul.mubr.f32.gmra.mxu0 %v196
    %v510 = vpop.f32.mrf.mxu0
    %v511 = vadd.f32 %v436, %v510
    %v512 = vpop.f32.mrf.mxu0
    %513 = vdwg.mxu0
    %514 = vmatprep.subr.mxu0 0.0
    %515 = vmatpush1.xpose.msra.mxu0 0.0
    %516 = vmatprep.subr.mxu0 0.0
    %517 = vmatpush1.xpose.msra.mxu0 0.0
    %518 = vmatprep.subr.mxu0 0.0
    %519 = vmatpush1.xpose.msra.mxu0 0.0
    %520 = vmatprep.subr.mxu0 0.0
    %521 = vmatpush1.xpose.msra.mxu0 0.0
    %522 = vmatprep.subr.mxu0 0.0
    %523 = vmatpush1.xpose.msra.mxu0 0.0
    %524 = vmatprep.subr.mxu0 0.0
    %525 = vmatpush1.xpose.msra.mxu0 0.0
    %526 = vmatprep.subr.mxu0 0.0
    %527 = vmatpush1.xpose.msra.mxu0 0.0
    %528 = vmatprep.subr.mxu0 0.0
    %529 = vmatpush1.xpose.msra.mxu0 0.0
    %530 = vmatprep.subr.mxu0 0.0
    %531 = vmatpush1.xpose.msra.mxu0 0.0
    %532 = vmatprep.subr.mxu0 0.0
    %533 = vmatpush1.xpose.msra.mxu0 0.0
    %534 = vmatprep.subr.mxu0 0.0
    %535 = vmatpush1.xpose.msra.mxu0 0.0
    %536 = vmatprep.subr.mxu0 0.0
    %537 = vmatpush1.xpose.msra.mxu0 0.0
    %538 = vmatprep.subr.mxu0 0.0
    %539 = vmatpush1.xpose.msra.mxu0 0.0
    %540 = vmatprep.subr.mxu0 0.0
    %541 = vmatpush1.xpose.msra.mxu0 0.0
    %542 = vmatprep.subr.mxu0 %v111
    %543 = vmatpush1.xpose.msra.mxu0 %v110
    %544 = vmatprep.subr.mxu0 %v103
    %545 = vmatpush1.xpose.msra.mxu0 %v102
    %546 = vmatprep.subr.mxu0 0.0
    %547 = vmatpush2.xpose.msra.mxu0 0.0
    %548 = vmatprep.subr.mxu0 0.0
    %549 = vmatpush2.xpose.msra.mxu0 0.0
    %550 = vmatprep.subr.mxu0 0.0
    %551 = vmatpush2.xpose.msra.mxu0 0.0
    %552 = vmatprep.subr.mxu0 0.0
    %553 = vmatpush2.xpose.msra.mxu0 0.0
    %554 = vmatprep.subr.mxu0 0.0
    %555 = vmatpush2.xpose.msra.mxu0 0.0
    %556 = vmatprep.subr.mxu0 0.0
    %557 = vmatpush2.xpose.msra.mxu0 0.0
    %558 = vmatprep.subr.mxu0 0.0
    %559 = vmatpush2.xpose.msra.mxu0 0.0
    %560 = vmatprep.subr.mxu0 0.0
    %561 = vmatpush2.xpose.msra.mxu0 0.0
    %562 = vmatprep.subr.mxu0 0.0
    %563 = vmatpush2.xpose.msra.mxu0 0.0
    %564 = vmatprep.subr.mxu0 0.0
    %565 = vmatpush2.xpose.msra.mxu0 0.0
    %566 = vmatprep.subr.mxu0 0.0
    %567 = vmatpush2.xpose.msra.mxu0 0.0
    %568 = vmatprep.subr.mxu0 0.0
    %569 = vmatpush2.xpose.msra.mxu0 0.0
    %570 = vmatprep.subr.mxu0 0.0
    %571 = vmatpush2.xpose.msra.mxu0 0.0
    %572 = vmatprep.subr.mxu0 0.0
    %573 = vmatpush2.xpose.msra.mxu0 0.0
    %574 = vmatprep.subr.mxu0 0.0
    %575 = vmatpush2.xpose.msra.mxu0 0.0
    %576 = vmatprep.subr.mxu0 0.0
    %577 = vmatpush2.xpose.msra.mxu0 0.0
    %578 = vmatprep.mubr.f32.mxu0 %v87
    %579 = vmatmul.mubr.f32.gmra.mxu0 %v86
    %v580 = vpop.f32.mrf.mxu0
    %v581 = vadd.f32 %v506, %v580
    %v582 = vpop.f32.mrf.mxu0
    %583 = vmatprep.mubr.f32.mxu0 %v95
    %584 = vmatmul.mubr.f32.gmra.mxu0 %v94
    %v585 = vpop.f32.mrf.mxu0
    %v586 = vadd.f32 %v511, %v585
    %v587 = vpop.f32.mrf.mxu0
    %588 = vdwg.mxu0
    %589 = vmatprep.subr.mxu0 0.0
    %590 = vmatpush1.xpose.msra.mxu0 0.0
    %591 = vmatprep.subr.mxu0 0.0
    %592 = vmatpush1.xpose.msra.mxu0 0.0
    %593 = vmatprep.subr.mxu0 0.0
    %594 = vmatpush1.xpose.msra.mxu0 0.0
    %595 = vmatprep.subr.mxu0 0.0
    %596 = vmatpush1.xpose.msra.mxu0 0.0
    %597 = vmatprep.subr.mxu0 0.0
    %598 = vmatpush1.xpose.msra.mxu0 0.0
    %599 = vmatprep.subr.mxu0 0.0
    %600 = vmatpush1.xpose.msra.mxu0 0.0
    %601 = vmatprep.subr.mxu0 0.0
    %602 = vmatpush1.xpose.msra.mxu0 0.0
    %603 = vmatprep.subr.mxu0 0.0
    %604 = vmatpush1.xpose.msra.mxu0 0.0
    %605 = vmatprep.subr.mxu0 0.0
    %606 = vmatpush1.xpose.msra.mxu0 0.0
    %607 = vmatprep.subr.mxu0 0.0
    %608 = vmatpush1.xpose.msra.mxu0 0.0
    %609 = vmatprep.subr.mxu0 0.0
    %610 = vmatpush1.xpose.msra.mxu0 0.0
    %611 = vmatprep.subr.mxu0 0.0
    %612 = vmatpush1.xpose.msra.mxu0 0.0
    %613 = vmatprep.subr.mxu0 0.0
    %614 = vmatpush1.xpose.msra.mxu0 0.0
    %615 = vmatprep.subr.mxu0 0.0
    %616 = vmatpush1.xpose.msra.mxu0 0.0
    %617 = vmatprep.subr.mxu0 %v113
    %618 = vmatpush1.xpose.msra.mxu0 %v112
    %619 = vmatprep.subr.mxu0 %v105
    %620 = vmatpush1.xpose.msra.mxu0 %v104
    %621 = vmatprep.subr.mxu0 0.0
    %622 = vmatpush2.xpose.msra.mxu0 0.0
    %623 = vmatprep.subr.mxu0 0.0
    %624 = vmatpush2.xpose.msra.mxu0 0.0
    %625 = vmatprep.subr.mxu0 0.0
    %626 = vmatpush2.xpose.msra.mxu0 0.0
    %627 = vmatprep.subr.mxu0 0.0
    %628 = vmatpush2.xpose.msra.mxu0 0.0
    %629 = vmatprep.subr.mxu0 0.0
    %630 = vmatpush2.xpose.msra.mxu0 0.0
    %631 = vmatprep.subr.mxu0 0.0
    %632 = vmatpush2.xpose.msra.mxu0 0.0
    %633 = vmatprep.subr.mxu0 0.0
    %634 = vmatpush2.xpose.msra.mxu0 0.0
    %635 = vmatprep.subr.mxu0 0.0
    %636 = vmatpush2.xpose.msra.mxu0 0.0
    %637 = vmatprep.subr.mxu0 0.0
    %638 = vmatpush2.xpose.msra.mxu0 0.0
    %639 = vmatprep.subr.mxu0 0.0
    %640 = vmatpush2.xpose.msra.mxu0 0.0
    %641 = vmatprep.subr.mxu0 0.0
    %642 = vmatpush2.xpose.msra.mxu0 0.0
    %643 = vmatprep.subr.mxu0 0.0
    %644 = vmatpush2.xpose.msra.mxu0 0.0
    %645 = vmatprep.subr.mxu0 0.0
    %646 = vmatpush2.xpose.msra.mxu0 0.0
    %647 = vmatprep.subr.mxu0 0.0
    %648 = vmatpush2.xpose.msra.mxu0 0.0
    %649 = vmatprep.subr.mxu0 0.0
    %650 = vmatpush2.xpose.msra.mxu0 0.0
    %651 = vmatprep.subr.mxu0 0.0
    %652 = vmatpush2.xpose.msra.mxu0 0.0
    %653 = vmatprep.mubr.f32.mxu0 %v89
    %654 = vmatmul.mubr.f32.gmra.mxu0 %v88
    %v655 = vpop.f32.mrf.mxu0
    %v656 = vadd.f32 %v581, %v655
    %v657 = vpop.f32.mrf.mxu0
    %658 = vmatprep.mubr.f32.mxu0 %v97
    %659 = vmatmul.mubr.f32.gmra.mxu0 %v96
    %v660 = vpop.f32.mrf.mxu0
    %v661 = vadd.f32 %v586, %v660
    %v662 = vpop.f32.mrf.mxu0
    %663 = vdwg.mxu0
    %664 = vmatprep.subr.mxu0 0.0
    %665 = vmatpush1.xpose.msra.mxu0 0.0
    %666 = vmatprep.subr.mxu0 0.0
    %667 = vmatpush1.xpose.msra.mxu0 0.0
    %668 = vmatprep.subr.mxu0 0.0
    %669 = vmatpush1.xpose.msra.mxu0 0.0
    %670 = vmatprep.subr.mxu0 0.0
    %671 = vmatpush1.xpose.msra.mxu0 0.0
    %672 = vmatprep.subr.mxu0 0.0
    %673 = vmatpush1.xpose.msra.mxu0 0.0
    %674 = vmatprep.subr.mxu0 0.0
    %675 = vmatpush1.xpose.msra.mxu0 0.0
    %676 = vmatprep.subr.mxu0 0.0
    %677 = vmatpush1.xpose.msra.mxu0 0.0
    %678 = vmatprep.subr.mxu0 0.0
    %679 = vmatpush1.xpose.msra.mxu0 0.0
    %680 = vmatprep.subr.mxu0 0.0
    %681 = vmatpush1.xpose.msra.mxu0 0.0
    %682 = vmatprep.subr.mxu0 0.0
    %683 = vmatpush1.xpose.msra.mxu0 0.0
    %684 = vmatprep.subr.mxu0 0.0
    %685 = vmatpush1.xpose.msra.mxu0 0.0
    %686 = vmatprep.subr.mxu0 0.0
    %687 = vmatpush1.xpose.msra.mxu0 0.0
    %688 = vmatprep.subr.mxu0 0.0
    %689 = vmatpush1.xpose.msra.mxu0 0.0
    %690 = vmatprep.subr.mxu0 0.0
    %691 = vmatpush1.xpose.msra.mxu0 0.0
    %692 = vmatprep.subr.mxu0 %v115
    %693 = vmatpush1.xpose.msra.mxu0 %v114
    %694 = vmatprep.subr.mxu0 %v107
    %695 = vmatpush1.xpose.msra.mxu0 %v106
    %696 = vmatprep.subr.mxu0 0.0
    %697 = vmatpush2.xpose.msra.mxu0 0.0
    %698 = vmatprep.subr.mxu0 0.0
    %699 = vmatpush2.xpose.msra.mxu0 0.0
    %700 = vmatprep.subr.mxu0 0.0
    %701 = vmatpush2.xpose.msra.mxu0 0.0
    %702 = vmatprep.subr.mxu0 0.0
    %703 = vmatpush2.xpose.msra.mxu0 0.0
    %704 = vmatprep.subr.mxu0 0.0
    %705 = vmatpush2.xpose.msra.mxu0 0.0
    %706 = vmatprep.subr.mxu0 0.0
    %707 = vmatpush2.xpose.msra.mxu0 0.0
    %708 = vmatprep.subr.mxu0 0.0
    %709 = vmatpush2.xpose.msra.mxu0 0.0
    %710 = vmatprep.subr.mxu0 0.0
    %711 = vmatpush2.xpose.msra.mxu0 0.0
    %712 = vmatprep.subr.mxu0 0.0
    %713 = vmatpush2.xpose.msra.mxu0 0.0
    %714 = vmatprep.subr.mxu0 0.0
    %715 = vmatpush2.xpose.msra.mxu0 0.0
    %716 = vmatprep.subr.mxu0 0.0
    %717 = vmatpush2.xpose.msra.mxu0 0.0
    %718 = vmatprep.subr.mxu0 0.0
    %719 = vmatpush2.xpose.msra.mxu0 0.0
    %720 = vmatprep.subr.mxu0 0.0
    %721 = vmatpush2.xpose.msra.mxu0 0.0
    %722 = vmatprep.subr.mxu0 0.0
    %723 = vmatpush2.xpose.msra.mxu0 0.0
    %724 = vmatprep.subr.mxu0 0.0
    %725 = vmatpush2.xpose.msra.mxu0 0.0
    %726 = vmatprep.subr.mxu0 0.0
    %727 = vmatpush2.xpose.msra.mxu0 0.0
    %728 = vmatprep.mubr.f32.mxu0 %v91
    %729 = vmatmul.mubr.f32.gmra.mxu0 %v90
    %v730 = vpop.f32.mrf.mxu0
    %v731 = vadd.f32 %v656, %v730
    %v732 = vpop.f32.mrf.mxu0
    %733 = vmatprep.mubr.f32.mxu0 %v99
    %734 = vmatmul.mubr.f32.gmra.mxu0 %v98
    %v735 = vpop.f32.mrf.mxu0
    %v736 = vadd.f32 %v661, %v735
    %v737 = vpop.f32.mrf.mxu0
    %738 = vdwg.mxu0
    %739 = vmatprep.subr.mxu0 0.0
    %740 = vmatpush1.xpose.msra.mxu0 0.0
    %741 = vmatprep.subr.mxu0 0.0
    %742 = vmatpush1.xpose.msra.mxu0 0.0
    %743 = vmatprep.subr.mxu0 0.0
    %744 = vmatpush1.xpose.msra.mxu0 0.0
    %745 = vmatprep.subr.mxu0 0.0
    %746 = vmatpush1.xpose.msra.mxu0 0.0
    %747 = vmatprep.subr.mxu0 0.0
    %748 = vmatpush1.xpose.msra.mxu0 0.0
    %749 = vmatprep.subr.mxu0 0.0
    %750 = vmatpush1.xpose.msra.mxu0 0.0
    %751 = vmatprep.subr.mxu0 0.0
    %752 = vmatpush1.xpose.msra.mxu0 0.0
    %753 = vmatprep.subr.mxu0 0.0
    %754 = vmatpush1.xpose.msra.mxu0 0.0
    %755 = vmatprep.subr.mxu0 0.0
    %756 = vmatpush1.xpose.msra.mxu0 0.0
    %757 = vmatprep.subr.mxu0 0.0
    %758 = vmatpush1.xpose.msra.mxu0 0.0
    %759 = vmatprep.subr.mxu0 0.0
    %760 = vmatpush1.xpose.msra.mxu0 0.0
    %761 = vmatprep.subr.mxu0 0.0
    %762 = vmatpush1.xpose.msra.mxu0 0.0
    %763 = vmatprep.subr.mxu0 0.0
    %764 = vmatpush1.xpose.msra.mxu0 0.0
    %765 = vmatprep.subr.mxu0 0.0
    %766 = vmatpush1.xpose.msra.mxu0 0.0
    %767 = vmatprep.subr.mxu0 %v117
    %768 = vmatpush1.xpose.msra.mxu0 %v116
    %769 = vmatprep.subr.mxu0 %v109
    %770 = vmatpush1.xpose.msra.mxu0 %v108
    %771 = vmatprep.subr.mxu0 0.0
    %772 = vmatpush2.xpose.msra.mxu0 0.0
    %773 = vmatprep.subr.mxu0 0.0
    %774 = vmatpush2.xpose.msra.mxu0 0.0
    %775 = vmatprep.subr.mxu0 0.0
    %776 = vmatpush2.xpose.msra.mxu0 0.0
    %777 = vmatprep.subr.mxu0 0.0
    %778 = vmatpush2.xpose.msra.mxu0 0.0
    %779 = vmatprep.subr.mxu0 0.0
    %780 = vmatpush2.xpose.msra.mxu0 0.0
    %781 = vmatprep.subr.mxu0 0.0
    %782 = vmatpush2.xpose.msra.mxu0 0.0
    %783 = vmatprep.subr.mxu0 0.0
    %784 = vmatpush2.xpose.msra.mxu0 0.0
    %785 = vmatprep.subr.mxu0 0.0
    %786 = vmatpush2.xpose.msra.mxu0 0.0
    %787 = vmatprep.subr.mxu0 0.0
    %788 = vmatpush2.xpose.msra.mxu0 0.0
    %789 = vmatprep.subr.mxu0 0.0
    %790 = vmatpush2.xpose.msra.mxu0 0.0
    %791 = vmatprep.subr.mxu0 0.0
    %792 = vmatpush2.xpose.msra.mxu0 0.0
    %793 = vmatprep.subr.mxu0 0.0
    %794 = vmatpush2.xpose.msra.mxu0 0.0
    %795 = vmatprep.subr.mxu0 0.0
    %796 = vmatpush2.xpose.msra.mxu0 0.0
    %797 = vmatprep.subr.mxu0 0.0
    %798 = vmatpush2.xpose.msra.mxu0 0.0
    %799 = vmatprep.subr.mxu0 0.0
    %800 = vmatpush2.xpose.msra.mxu0 0.0
    %801 = vmatprep.subr.mxu0 0.0
    %802 = vmatpush2.xpose.msra.mxu0 0.0
    %803 = vmatprep.mubr.f32.mxu0 %v93
    %804 = vmatmul.mubr.f32.gmra.mxu0 %v92
    %v805 = vpop.f32.mrf.mxu0
    %v806 = vadd.f32 %v731, %v805
    %v807 = vpop.f32.mrf.mxu0
    %808 = vmatprep.mubr.f32.mxu0 %v101
    %809 = vmatmul.mubr.f32.gmra.mxu0 %v100
    %v810 = vpop.f32.mrf.mxu0
    %v811 = vadd.f32 %v736, %v810
    %v812 = vpop.f32.mrf.mxu0
    %813 = vdwg.mxu0
    %814 = vmatprep.subr.mxu0 0.0
    %815 = vmatpush1.xpose.msra.mxu0 0.0
    %816 = vmatprep.subr.mxu0 0.0
    %817 = vmatpush1.xpose.msra.mxu0 0.0
    %818 = vmatprep.subr.mxu0 0.0
    %819 = vmatpush1.xpose.msra.mxu0 0.0
    %820 = vmatprep.subr.mxu0 0.0
    %821 = vmatpush1.xpose.msra.mxu0 0.0
    %822 = vmatprep.subr.mxu0 0.0
    %823 = vmatpush1.xpose.msra.mxu0 0.0
    %824 = vmatprep.subr.mxu0 0.0
    %825 = vmatpush1.xpose.msra.mxu0 0.0
    %826 = vmatprep.subr.mxu0 0.0
    %827 = vmatpush1.xpose.msra.mxu0 0.0
    %828 = vmatprep.subr.mxu0 0.0
    %829 = vmatpush1.xpose.msra.mxu0 0.0
    %830 = vmatprep.subr.mxu0 0.0
    %831 = vmatpush1.xpose.msra.mxu0 0.0
    %832 = vmatprep.subr.mxu0 0.0
    %833 = vmatpush1.xpose.msra.mxu0 0.0
    %834 = vmatprep.subr.mxu0 0.0
    %835 = vmatpush1.xpose.msra.mxu0 0.0
    %836 = vmatprep.subr.mxu0 0.0
    %837 = vmatpush1.xpose.msra.mxu0 0.0
    %838 = vmatprep.subr.mxu0 0.0
    %839 = vmatpush1.xpose.msra.mxu0 0.0
    %840 = vmatprep.subr.mxu0 0.0
    %841 = vmatpush1.xpose.msra.mxu0 0.0
    %842 = vmatprep.subr.mxu0 %v191
    %843 = vmatpush1.xpose.msra.mxu0 %v190
    %844 = vmatprep.subr.mxu0 %v183
    %845 = vmatpush1.xpose.msra.mxu0 %v182
    %846 = vmatprep.subr.mxu0 0.0
    %847 = vmatpush2.xpose.msra.mxu0 0.0
    %848 = vmatprep.subr.mxu0 0.0
    %849 = vmatpush2.xpose.msra.mxu0 0.0
    %850 = vmatprep.subr.mxu0 0.0
    %851 = vmatpush2.xpose.msra.mxu0 0.0
    %852 = vmatprep.subr.mxu0 0.0
    %853 = vmatpush2.xpose.msra.mxu0 0.0
    %854 = vmatprep.subr.mxu0 0.0
    %855 = vmatpush2.xpose.msra.mxu0 0.0
    %856 = vmatprep.subr.mxu0 0.0
    %857 = vmatpush2.xpose.msra.mxu0 0.0
    %858 = vmatprep.subr.mxu0 0.0
    %859 = vmatpush2.xpose.msra.mxu0 0.0
    %860 = vmatprep.subr.mxu0 0.0
    %861 = vmatpush2.xpose.msra.mxu0 0.0
    %862 = vmatprep.subr.mxu0 0.0
    %863 = vmatpush2.xpose.msra.mxu0 0.0
    %864 = vmatprep.subr.mxu0 0.0
    %865 = vmatpush2.xpose.msra.mxu0 0.0
    %866 = vmatprep.subr.mxu0 0.0
    %867 = vmatpush2.xpose.msra.mxu0 0.0
    %868 = vmatprep.subr.mxu0 0.0
    %869 = vmatpush2.xpose.msra.mxu0 0.0
    %870 = vmatprep.subr.mxu0 0.0
    %871 = vmatpush2.xpose.msra.mxu0 0.0
    %872 = vmatprep.subr.mxu0 0.0
    %873 = vmatpush2.xpose.msra.mxu0 0.0
    %874 = vmatprep.subr.mxu0 0.0
    %875 = vmatpush2.xpose.msra.mxu0 0.0
    %876 = vmatprep.subr.mxu0 0.0
    %877 = vmatpush2.xpose.msra.mxu0 0.0
    %878 = vmatprep.mubr.f32.mxu0 %v183
    %879 = vmatmul.mubr.f32.gmra.mxu0 %v182
    %v880 = vpop.f32.mrf.mxu0
    %v881 = vadd.f32 0.0, %v880
    %v882 = vpop.f32.mrf.mxu0
    %883 = vmatprep.mubr.f32.mxu0 %v191
    %884 = vmatmul.mubr.f32.gmra.mxu0 %v190
    %v885 = vpop.f32.mrf.mxu0
    %v886 = vadd.f32 0.0, %v885
    %v887 = vpop.f32.mrf.mxu0
    %888 = vdwg.mxu0
    %889 = vmatprep.subr.mxu0 0.0
    %890 = vmatpush1.xpose.msra.mxu0 0.0
    %891 = vmatprep.subr.mxu0 0.0
    %892 = vmatpush1.xpose.msra.mxu0 0.0
    %893 = vmatprep.subr.mxu0 0.0
    %894 = vmatpush1.xpose.msra.mxu0 0.0
    %895 = vmatprep.subr.mxu0 0.0
    %896 = vmatpush1.xpose.msra.mxu0 0.0
    %897 = vmatprep.subr.mxu0 0.0
    %898 = vmatpush1.xpose.msra.mxu0 0.0
    %899 = vmatprep.subr.mxu0 0.0
    %900 = vmatpush1.xpose.msra.mxu0 0.0
    %901 = vmatprep.subr.mxu0 0.0
    %902 = vmatpush1.xpose.msra.mxu0 0.0
    %903 = vmatprep.subr.mxu0 0.0
    %904 = vmatpush1.xpose.msra.mxu0 0.0
    %905 = vmatprep.subr.mxu0 0.0
    %906 = vmatpush1.xpose.msra.mxu0 0.0
    %907 = vmatprep.subr.mxu0 0.0
    %908 = vmatpush1.xpose.msra.mxu0 0.0
    %909 = vmatprep.subr.mxu0 0.0
    %910 = vmatpush1.xpose.msra.mxu0 0.0
    %911 = vmatprep.subr.mxu0 0.0
    %912 = vmatpush1.xpose.msra.mxu0 0.0
    %913 = vmatprep.subr.mxu0 0.0
    %914 = vmatpush1.xpose.msra.mxu0 0.0
    %915 = vmatprep.subr.mxu0 0.0
    %916 = vmatpush1.xpose.msra.mxu0 0.0
    %917 = vmatprep.subr.mxu0 %v193
    %918 = vmatpush1.xpose.msra.mxu0 %v192
    %919 = vmatprep.subr.mxu0 %v185
    %920 = vmatpush1.xpose.msra.mxu0 %v184
    %921 = vmatprep.subr.mxu0 0.0
    %922 = vmatpush2.xpose.msra.mxu0 0.0
    %923 = vmatprep.subr.mxu0 0.0
    %924 = vmatpush2.xpose.msra.mxu0 0.0
    %925 = vmatprep.subr.mxu0 0.0
    %926 = vmatpush2.xpose.msra.mxu0 0.0
    %927 = vmatprep.subr.mxu0 0.0
    %928 = vmatpush2.xpose.msra.mxu0 0.0
    %929 = vmatprep.subr.mxu0 0.0
    %930 = vmatpush2.xpose.msra.mxu0 0.0
    %931 = vmatprep.subr.mxu0 0.0
    %932 = vmatpush2.xpose.msra.mxu0 0.0
    %933 = vmatprep.subr.mxu0 0.0
    %934 = vmatpush2.xpose.msra.mxu0 0.0
    %935 = vmatprep.subr.mxu0 0.0
    %936 = vmatpush2.xpose.msra.mxu0 0.0
    %937 = vmatprep.subr.mxu0 0.0
    %938 = vmatpush2.xpose.msra.mxu0 0.0
    %939 = vmatprep.subr.mxu0 0.0
    %940 = vmatpush2.xpose.msra.mxu0 0.0
    %941 = vmatprep.subr.mxu0 0.0
    %942 = vmatpush2.xpose.msra.mxu0 0.0
    %943 = vmatprep.subr.mxu0 0.0
    %944 = vmatpush2.xpose.msra.mxu0 0.0
    %945 = vmatprep.subr.mxu0 0.0
    %946 = vmatpush2.xpose.msra.mxu0 0.0
    %947 = vmatprep.subr.mxu0 0.0
    %948 = vmatpush2.xpose.msra.mxu0 0.0
    %949 = vmatprep.subr.mxu0 0.0
    %950 = vmatpush2.xpose.msra.mxu0 0.0
    %951 = vmatprep.subr.mxu0 0.0
    %952 = vmatpush2.xpose.msra.mxu0 0.0
    %953 = vmatprep.mubr.f32.mxu0 %v185
    %954 = vmatmul.mubr.f32.gmra.mxu0 %v184
    %v955 = vpop.f32.mrf.mxu0
    %v956 = vadd.f32 %v881, %v955
    %v957 = vpop.f32.mrf.mxu0
    %958 = vmatprep.mubr.f32.mxu0 %v193
    %959 = vmatmul.mubr.f32.gmra.mxu0 %v192
    %v960 = vpop.f32.mrf.mxu0
    %v961 = vadd.f32 %v886, %v960
    %v962 = vpop.f32.mrf.mxu0
    %963 = vdwg.mxu0
    %964 = vmatprep.subr.mxu0 0.0
    %965 = vmatpush1.xpose.msra.mxu0 0.0
    %966 = vmatprep.subr.mxu0 0.0
    %967 = vmatpush1.xpose.msra.mxu0 0.0
    %968 = vmatprep.subr.mxu0 0.0
    %969 = vmatpush1.xpose.msra.mxu0 0.0
    %970 = vmatprep.subr.mxu0 0.0
    %971 = vmatpush1.xpose.msra.mxu0 0.0
    %972 = vmatprep.subr.mxu0 0.0
    %973 = vmatpush1.xpose.msra.mxu0 0.0
    %974 = vmatprep.subr.mxu0 0.0
    %975 = vmatpush1.xpose.msra.mxu0 0.0
    %976 = vmatprep.subr.mxu0 0.0
    %977 = vmatpush1.xpose.msra.mxu0 0.0
    %978 = vmatprep.subr.mxu0 0.0
    %979 = vmatpush1.xpose.msra.mxu0 0.0
    %980 = vmatprep.subr.mxu0 0.0
    %981 = vmatpush1.xpose.msra.mxu0 0.0
    %982 = vmatprep.subr.mxu0 0.0
    %983 = vmatpush1.xpose.msra.mxu0 0.0
    %984 = vmatprep.subr.mxu0 0.0
    %985 = vmatpush1.xpose.msra.mxu0 0.0
    %986 = vmatprep.subr.mxu0 0.0
    %987 = vmatpush1.xpose.msra.mxu0 0.0
    %988 = vmatprep.subr.mxu0 0.0
    %989 = vmatpush1.xpose.msra.mxu0 0.0
    %990 = vmatprep.subr.mxu0 0.0
    %991 = vmatpush1.xpose.msra.mxu0 0.0
    %992 = vmatprep.subr.mxu0 %v195
    %993 = vmatpush1.xpose.msra.mxu0 %v194
    %994 = vmatprep.subr.mxu0 %v187
    %995 = vmatpush1.xpose.msra.mxu0 %v186
    %996 = vmatprep.subr.mxu0 0.0
    %997 = vmatpush2.xpose.msra.mxu0 0.0
    %998 = vmatprep.subr.mxu0 0.0
    %999 = vmatpush2.xpose.msra.mxu0 0.0
    %1000 = vmatprep.subr.mxu0 0.0
    %1001 = vmatpush2.xpose.msra.mxu0 0.0
    %1002 = vmatprep.subr.mxu0 0.0
    %1003 = vmatpush2.xpose.msra.mxu0 0.0
    %1004 = vmatprep.subr.mxu0 0.0
    %1005 = vmatpush2.xpose.msra.mxu0 0.0
    %1006 = vmatprep.subr.mxu0 0.0
    %1007 = vmatpush2.xpose.msra.mxu0 0.0
    %1008 = vmatprep.subr.mxu0 0.0
    %1009 = vmatpush2.xpose.msra.mxu0 0.0
    %1010 = vmatprep.subr.mxu0 0.0
    %1011 = vmatpush2.xpose.msra.mxu0 0.0
    %1012 = vmatprep.subr.mxu0 0.0
    %1013 = vmatpush2.xpose.msra.mxu0 0.0
    %1014 = vmatprep.subr.mxu0 0.0
    %1015 = vmatpush2.xpose.msra.mxu0 0.0
    %1016 = vmatprep.subr.mxu0 0.0
    %1017 = vmatpush2.xpose.msra.mxu0 0.0
    %1018 = vmatprep.subr.mxu0 0.0
    %1019 = vmatpush2.xpose.msra.mxu0 0.0
    %1020 = vmatprep.subr.mxu0 0.0
    %1021 = vmatpush2.xpose.msra.mxu0 0.0
    %1022 = vmatprep.subr.mxu0 0.0
    %1023 = vmatpush2.xpose.msra.mxu0 0.0
    %1024 = vmatprep.subr.mxu0 0.0
    %1025 = vmatpush2.xpose.msra.mxu0 0.0
    %1026 = vmatprep.subr.mxu0 0.0
    %1027 = vmatpush2.xpose.msra.mxu0 0.0
    %1028 = vmatprep.mubr.f32.mxu0 %v187
    %1029 = vmatmul.mubr.f32.gmra.mxu0 %v186
    %v1030 = vpop.f32.mrf.mxu0
    %v1031 = vadd.f32 %v956, %v1030
    %v1032 = vpop.f32.mrf.mxu0
    %1033 = vmatprep.mubr.f32.mxu0 %v195
    %1034 = vmatmul.mubr.f32.gmra.mxu0 %v194
    %v1035 = vpop.f32.mrf.mxu0
    %v1036 = vadd.f32 %v961, %v1035
    %v1037 = vpop.f32.mrf.mxu0
    %1038 = vdwg.mxu0
    %1039 = vmatprep.subr.mxu0 0.0
    %1040 = vmatpush1.xpose.msra.mxu0 0.0
    %1041 = vmatprep.subr.mxu0 0.0
    %1042 = vmatpush1.xpose.msra.mxu0 0.0
    %1043 = vmatprep.subr.mxu0 0.0
    %1044 = vmatpush1.xpose.msra.mxu0 0.0
    %1045 = vmatprep.subr.mxu0 0.0
    %1046 = vmatpush1.xpose.msra.mxu0 0.0
    %1047 = vmatprep.subr.mxu0 0.0
    %1048 = vmatpush1.xpose.msra.mxu0 0.0
    %1049 = vmatprep.subr.mxu0 0.0
    %1050 = vmatpush1.xpose.msra.mxu0 0.0
    %1051 = vmatprep.subr.mxu0 0.0
    %1052 = vmatpush1.xpose.msra.mxu0 0.0
    %1053 = vmatprep.subr.mxu0 0.0
    %1054 = vmatpush1.xpose.msra.mxu0 0.0
    %1055 = vmatprep.subr.mxu0 0.0
    %1056 = vmatpush1.xpose.msra.mxu0 0.0
    %1057 = vmatprep.subr.mxu0 0.0
    %1058 = vmatpush1.xpose.msra.mxu0 0.0
    %1059 = vmatprep.subr.mxu0 0.0
    %1060 = vmatpush1.xpose.msra.mxu0 0.0
    %1061 = vmatprep.subr.mxu0 0.0
    %1062 = vmatpush1.xpose.msra.mxu0 0.0
    %1063 = vmatprep.subr.mxu0 0.0
    %1064 = vmatpush1.xpose.msra.mxu0 0.0
    %1065 = vmatprep.subr.mxu0 0.0
    %1066 = vmatpush1.xpose.msra.mxu0 0.0
    %1067 = vmatprep.subr.mxu0 %v197
    %1068 = vmatpush1.xpose.msra.mxu0 %v196
    %1069 = vmatprep.subr.mxu0 %v189
    %1070 = vmatpush1.xpose.msra.mxu0 %v188
    %1071 = vmatprep.subr.mxu0 0.0
    %1072 = vmatpush2.xpose.msra.mxu0 0.0
    %1073 = vmatprep.subr.mxu0 0.0
    %1074 = vmatpush2.xpose.msra.mxu0 0.0
    %1075 = vmatprep.subr.mxu0 0.0
    %1076 = vmatpush2.xpose.msra.mxu0 0.0
    %1077 = vmatprep.subr.mxu0 0.0
    %1078 = vmatpush2.xpose.msra.mxu0 0.0
    %1079 = vmatprep.subr.mxu0 0.0
    %1080 = vmatpush2.xpose.msra.mxu0 0.0
    %1081 = vmatprep.subr.mxu0 0.0
    %1082 = vmatpush2.xpose.msra.mxu0 0.0
    %1083 = vmatprep.subr.mxu0 0.0
    %1084 = vmatpush2.xpose.msra.mxu0 0.0
    %1085 = vmatprep.subr.mxu0 0.0
    %1086 = vmatpush2.xpose.msra.mxu0 0.0
    %1087 = vmatprep.subr.mxu0 0.0
    %1088 = vmatpush2.xpose.msra.mxu0 0.0
    %1089 = vmatprep.subr.mxu0 0.0
    %1090 = vmatpush2.xpose.msra.mxu0 0.0
    %1091 = vmatprep.subr.mxu0 0.0
    %1092 = vmatpush2.xpose.msra.mxu0 0.0
    %1093 = vmatprep.subr.mxu0 0.0
    %1094 = vmatpush2.xpose.msra.mxu0 0.0
    %1095 = vmatprep.subr.mxu0 0.0
    %1096 = vmatpush2.xpose.msra.mxu0 0.0
    %1097 = vmatprep.subr.mxu0 0.0
    %1098 = vmatpush2.xpose.msra.mxu0 0.0
    %1099 = vmatprep.subr.mxu0 0.0
    %1100 = vmatpush2.xpose.msra.mxu0 0.0
    %1101 = vmatprep.subr.mxu0 0.0
    %1102 = vmatpush2.xpose.msra.mxu0 0.0
    %1103 = vmatprep.mubr.f32.mxu0 %v189
    %1104 = vmatmul.mubr.f32.gmra.mxu0 %v188
    %v1105 = vpop.f32.mrf.mxu0
    %v1106 = vadd.f32 %v1031, %v1105
    %v1107 = vpop.f32.mrf.mxu0
    %1108 = vmatprep.mubr.f32.mxu0 %v197
    %1109 = vmatmul.mubr.f32.gmra.mxu0 %v196
    %v1110 = vpop.f32.mrf.mxu0
    %v1111 = vadd.f32 %v1036, %v1110
    %v1112 = vpop.f32.mrf.mxu0
    %1113 = vdwg.mxu0
    %1114 = vmatprep.subr.mxu0 0.0
    %1115 = vmatpush1.xpose.msra.mxu0 0.0
    %1116 = vmatprep.subr.mxu0 0.0
    %1117 = vmatpush1.xpose.msra.mxu0 0.0
    %1118 = vmatprep.subr.mxu0 0.0
    %1119 = vmatpush1.xpose.msra.mxu0 0.0
    %1120 = vmatprep.subr.mxu0 0.0
    %1121 = vmatpush1.xpose.msra.mxu0 0.0
    %1122 = vmatprep.subr.mxu0 0.0
    %1123 = vmatpush1.xpose.msra.mxu0 0.0
    %1124 = vmatprep.subr.mxu0 0.0
    %1125 = vmatpush1.xpose.msra.mxu0 0.0
    %1126 = vmatprep.subr.mxu0 0.0
    %1127 = vmatpush1.xpose.msra.mxu0 0.0
    %1128 = vmatprep.subr.mxu0 0.0
    %1129 = vmatpush1.xpose.msra.mxu0 0.0
    %1130 = vmatprep.subr.mxu0 0.0
    %1131 = vmatpush1.xpose.msra.mxu0 0.0
    %1132 = vmatprep.subr.mxu0 0.0
    %1133 = vmatpush1.xpose.msra.mxu0 0.0
    %1134 = vmatprep.subr.mxu0 0.0
    %1135 = vmatpush1.xpose.msra.mxu0 0.0
    %1136 = vmatprep.subr.mxu0 0.0
    %1137 = vmatpush1.xpose.msra.mxu0 0.0
    %1138 = vmatprep.subr.mxu0 0.0
    %1139 = vmatpush1.xpose.msra.mxu0 0.0
    %1140 = vmatprep.subr.mxu0 0.0
    %1141 = vmatpush1.xpose.msra.mxu0 0.0
    %1142 = vmatprep.subr.mxu0 %v95
    %1143 = vmatpush1.xpose.msra.mxu0 %v94
    %1144 = vmatprep.subr.mxu0 %v87
    %1145 = vmatpush1.xpose.msra.mxu0 %v86
    %1146 = vmatprep.subr.mxu0 0.0
    %1147 = vmatpush2.xpose.msra.mxu0 0.0
    %1148 = vmatprep.subr.mxu0 0.0
    %1149 = vmatpush2.xpose.msra.mxu0 0.0
    %1150 = vmatprep.subr.mxu0 0.0
    %1151 = vmatpush2.xpose.msra.mxu0 0.0
    %1152 = vmatprep.subr.mxu0 0.0
    %1153 = vmatpush2.xpose.msra.mxu0 0.0
    %1154 = vmatprep.subr.mxu0 0.0
    %1155 = vmatpush2.xpose.msra.mxu0 0.0
    %1156 = vmatprep.subr.mxu0 0.0
    %1157 = vmatpush2.xpose.msra.mxu0 0.0
    %1158 = vmatprep.subr.mxu0 0.0
    %1159 = vmatpush2.xpose.msra.mxu0 0.0
    %1160 = vmatprep.subr.mxu0 0.0
    %1161 = vmatpush2.xpose.msra.mxu0 0.0
    %1162 = vmatprep.subr.mxu0 0.0
    %1163 = vmatpush2.xpose.msra.mxu0 0.0
    %1164 = vmatprep.subr.mxu0 0.0
    %1165 = vmatpush2.xpose.msra.mxu0 0.0
    %1166 = vmatprep.subr.mxu0 0.0
    %1167 = vmatpush2.xpose.msra.mxu0 0.0
    %1168 = vmatprep.subr.mxu0 0.0
    %1169 = vmatpush2.xpose.msra.mxu0 0.0
    %1170 = vmatprep.subr.mxu0 0.0
    %1171 = vmatpush2.xpose.msra.mxu0 0.0
    %1172 = vmatprep.subr.mxu0 0.0
    %1173 = vmatpush2.xpose.msra.mxu0 0.0
    %1174 = vmatprep.subr.mxu0 0.0
    %1175 = vmatpush2.xpose.msra.mxu0 0.0
    %1176 = vmatprep.subr.mxu0 0.0
    %1177 = vmatpush2.xpose.msra.mxu0 0.0
    %1178 = vmatprep.mubr.f32.mxu0 %v87
    %1179 = vmatmul.mubr.f32.gmra.mxu0 %v86
    %v1180 = vpop.f32.mrf.mxu0
    %v1181 = vadd.f32 %v1106, %v1180
    %v1182 = vpop.f32.mrf.mxu0
    %1183 = vmatprep.mubr.f32.mxu0 %v95
    %1184 = vmatmul.mubr.f32.gmra.mxu0 %v94
    %v1185 = vpop.f32.mrf.mxu0
    %v1186 = vadd.f32 %v1111, %v1185
    %v1187 = vpop.f32.mrf.mxu0
    %1188 = vdwg.mxu0
    %1189 = vmatprep.subr.mxu0 0.0
    %1190 = vmatpush1.xpose.msra.mxu0 0.0
    %1191 = vmatprep.subr.mxu0 0.0
    %1192 = vmatpush1.xpose.msra.mxu0 0.0
    %1193 = vmatprep.subr.mxu0 0.0
    %1194 = vmatpush1.xpose.msra.mxu0 0.0
    %1195 = vmatprep.subr.mxu0 0.0
    %1196 = vmatpush1.xpose.msra.mxu0 0.0
    %1197 = vmatprep.subr.mxu0 0.0
    %1198 = vmatpush1.xpose.msra.mxu0 0.0
    %1199 = vmatprep.subr.mxu0 0.0
    %1200 = vmatpush1.xpose.msra.mxu0 0.0
    %1201 = vmatprep.subr.mxu0 0.0
    %1202 = vmatpush1.xpose.msra.mxu0 0.0
    %1203 = vmatprep.subr.mxu0 0.0
    %1204 = vmatpush1.xpose.msra.mxu0 0.0
    %1205 = vmatprep.subr.mxu0 0.0
    %1206 = vmatpush1.xpose.msra.mxu0 0.0
    %1207 = vmatprep.subr.mxu0 0.0
    %1208 = vmatpush1.xpose.msra.mxu0 0.0
    %1209 = vmatprep.subr.mxu0 0.0
    %1210 = vmatpush1.xpose.msra.mxu0 0.0
    %1211 = vmatprep.subr.mxu0 0.0
    %1212 = vmatpush1.xpose.msra.mxu0 0.0
    %1213 = vmatprep.subr.mxu0 0.0
    %1214 = vmatpush1.xpose.msra.mxu0 0.0
    %1215 = vmatprep.subr.mxu0 0.0
    %1216 = vmatpush1.xpose.msra.mxu0 0.0
    %1217 = vmatprep.subr.mxu0 %v97
    %1218 = vmatpush1.xpose.msra.mxu0 %v96
    %1219 = vmatprep.subr.mxu0 %v89
    %1220 = vmatpush1.xpose.msra.mxu0 %v88
    %1221 = vmatprep.subr.mxu0 0.0
    %1222 = vmatpush2.xpose.msra.mxu0 0.0
    %1223 = vmatprep.subr.mxu0 0.0
    %1224 = vmatpush2.xpose.msra.mxu0 0.0
    %1225 = vmatprep.subr.mxu0 0.0
    %1226 = vmatpush2.xpose.msra.mxu0 0.0
    %1227 = vmatprep.subr.mxu0 0.0
    %1228 = vmatpush2.xpose.msra.mxu0 0.0
    %1229 = vmatprep.subr.mxu0 0.0
    %1230 = vmatpush2.xpose.msra.mxu0 0.0
    %1231 = vmatprep.subr.mxu0 0.0
    %1232 = vmatpush2.xpose.msra.mxu0 0.0
    %1233 = vmatprep.subr.mxu0 0.0
    %1234 = vmatpush2.xpose.msra.mxu0 0.0
    %1235 = vmatprep.subr.mxu0 0.0
    %1236 = vmatpush2.xpose.msra.mxu0 0.0
    %1237 = vmatprep.subr.mxu0 0.0
    %1238 = vmatpush2.xpose.msra.mxu0 0.0
    %1239 = vmatprep.subr.mxu0 0.0
    %1240 = vmatpush2.xpose.msra.mxu0 0.0
    %1241 = vmatprep.subr.mxu0 0.0
    %1242 = vmatpush2.xpose.msra.mxu0 0.0
    %1243 = vmatprep.subr.mxu0 0.0
    %1244 = vmatpush2.xpose.msra.mxu0 0.0
    %1245 = vmatprep.subr.mxu0 0.0
    %1246 = vmatpush2.xpose.msra.mxu0 0.0
    %1247 = vmatprep.subr.mxu0 0.0
    %1248 = vmatpush2.xpose.msra.mxu0 0.0
    %1249 = vmatprep.subr.mxu0 0.0
    %1250 = vmatpush2.xpose.msra.mxu0 0.0
    %1251 = vmatprep.subr.mxu0 0.0
    %1252 = vmatpush2.xpose.msra.mxu0 0.0
    %1253 = vmatprep.mubr.f32.mxu0 %v89
    %1254 = vmatmul.mubr.f32.gmra.mxu0 %v88
    %v1255 = vpop.f32.mrf.mxu0
    %v1256 = vadd.f32 %v1181, %v1255
    %v1257 = vpop.f32.mrf.mxu0
    %1258 = vmatprep.mubr.f32.mxu0 %v97
    %1259 = vmatmul.mubr.f32.gmra.mxu0 %v96
    %v1260 = vpop.f32.mrf.mxu0
    %v1261 = vadd.f32 %v1186, %v1260
    %v1262 = vpop.f32.mrf.mxu0
    %1263 = vdwg.mxu0
    %1264 = vmatprep.subr.mxu0 0.0
    %1265 = vmatpush1.xpose.msra.mxu0 0.0
    %1266 = vmatprep.subr.mxu0 0.0
    %1267 = vmatpush1.xpose.msra.mxu0 0.0
    %1268 = vmatprep.subr.mxu0 0.0
    %1269 = vmatpush1.xpose.msra.mxu0 0.0
    %1270 = vmatprep.subr.mxu0 0.0
    %1271 = vmatpush1.xpose.msra.mxu0 0.0
    %1272 = vmatprep.subr.mxu0 0.0
    %1273 = vmatpush1.xpose.msra.mxu0 0.0
    %1274 = vmatprep.subr.mxu0 0.0
    %1275 = vmatpush1.xpose.msra.mxu0 0.0
    %1276 = vmatprep.subr.mxu0 0.0
    %1277 = vmatpush1.xpose.msra.mxu0 0.0
    %1278 = vmatprep.subr.mxu0 0.0
    %1279 = vmatpush1.xpose.msra.mxu0 0.0
    %1280 = vmatprep.subr.mxu0 0.0
    %1281 = vmatpush1.xpose.msra.mxu0 0.0
    %1282 = vmatprep.subr.mxu0 0.0
    %1283 = vmatpush1.xpose.msra.mxu0 0.0
    %1284 = vmatprep.subr.mxu0 0.0
    %1285 = vmatpush1.xpose.msra.mxu0 0.0
    %1286 = vmatprep.subr.mxu0 0.0
    %1287 = vmatpush1.xpose.msra.mxu0 0.0
    %1288 = vmatprep.subr.mxu0 0.0
    %1289 = vmatpush1.xpose.msra.mxu0 0.0
    %1290 = vmatprep.subr.mxu0 0.0
    %1291 = vmatpush1.xpose.msra.mxu0 0.0
    %1292 = vmatprep.subr.mxu0 %v99
    %1293 = vmatpush1.xpose.msra.mxu0 %v98
    %1294 = vmatprep.subr.mxu0 %v91
    %1295 = vmatpush1.xpose.msra.mxu0 %v90
    %1296 = vmatprep.subr.mxu0 0.0
    %1297 = vmatpush2.xpose.msra.mxu0 0.0
    %1298 = vmatprep.subr.mxu0 0.0
    %1299 = vmatpush2.xpose.msra.mxu0 0.0
    %1300 = vmatprep.subr.mxu0 0.0
    %1301 = vmatpush2.xpose.msra.mxu0 0.0
    %1302 = vmatprep.subr.mxu0 0.0
    %1303 = vmatpush2.xpose.msra.mxu0 0.0
    %1304 = vmatprep.subr.mxu0 0.0
    %1305 = vmatpush2.xpose.msra.mxu0 0.0
    %1306 = vmatprep.subr.mxu0 0.0
    %1307 = vmatpush2.xpose.msra.mxu0 0.0
    %1308 = vmatprep.subr.mxu0 0.0
    %1309 = vmatpush2.xpose.msra.mxu0 0.0
    %1310 = vmatprep.subr.mxu0 0.0
    %1311 = vmatpush2.xpose.msra.mxu0 0.0
    %1312 = vmatprep.subr.mxu0 0.0
    %1313 = vmatpush2.xpose.msra.mxu0 0.0
    %1314 = vmatprep.subr.mxu0 0.0
    %1315 = vmatpush2.xpose.msra.mxu0 0.0
    %1316 = vmatprep.subr.mxu0 0.0
    %1317 = vmatpush2.xpose.msra.mxu0 0.0
    %1318 = vmatprep.subr.mxu0 0.0
    %1319 = vmatpush2.xpose.msra.mxu0 0.0
    %1320 = vmatprep.subr.mxu0 0.0
    %1321 = vmatpush2.xpose.msra.mxu0 0.0
    %1322 = vmatprep.subr.mxu0 0.0
    %1323 = vmatpush2.xpose.msra.mxu0 0.0
    %1324 = vmatprep.subr.mxu0 0.0
    %1325 = vmatpush2.xpose.msra.mxu0 0.0
    %1326 = vmatprep.subr.mxu0 0.0
    %1327 = vmatpush2.xpose.msra.mxu0 0.0
    %1328 = vmatprep.mubr.f32.mxu0 %v91
    %1329 = vmatmul.mubr.f32.gmra.mxu0 %v90
    %v1330 = vpop.f32.mrf.mxu0
    %v1331 = vadd.f32 %v1256, %v1330
    %v1332 = vpop.f32.mrf.mxu0
    %1333 = vmatprep.mubr.f32.mxu0 %v99
    %1334 = vmatmul.mubr.f32.gmra.mxu0 %v98
    %v1335 = vpop.f32.mrf.mxu0
    %v1336 = vadd.f32 %v1261, %v1335
    %v1337 = vpop.f32.mrf.mxu0
    %1338 = vdwg.mxu0
    %1339 = vmatprep.subr.mxu0 0.0
    %1340 = vmatpush1.xpose.msra.mxu0 0.0
    %1341 = vmatprep.subr.mxu0 0.0
    %1342 = vmatpush1.xpose.msra.mxu0 0.0
    %1343 = vmatprep.subr.mxu0 0.0
    %1344 = vmatpush1.xpose.msra.mxu0 0.0
    %1345 = vmatprep.subr.mxu0 0.0
    %1346 = vmatpush1.xpose.msra.mxu0 0.0
    %1347 = vmatprep.subr.mxu0 0.0
    %1348 = vmatpush1.xpose.msra.mxu0 0.0
    %1349 = vmatprep.subr.mxu0 0.0
    %1350 = vmatpush1.xpose.msra.mxu0 0.0
    %1351 = vmatprep.subr.mxu0 0.0
    %1352 = vmatpush1.xpose.msra.mxu0 0.0
    %1353 = vmatprep.subr.mxu0 0.0
    %1354 = vmatpush1.xpose.msra.mxu0 0.0
    %1355 = vmatprep.subr.mxu0 0.0
    %1356 = vmatpush1.xpose.msra.mxu0 0.0
    %1357 = vmatprep.subr.mxu0 0.0
    %1358 = vmatpush1.xpose.msra.mxu0 0.0
    %1359 = vmatprep.subr.mxu0 0.0
    %1360 = vmatpush1.xpose.msra.mxu0 0.0
    %1361 = vmatprep.subr.mxu0 0.0
    %1362 = vmatpush1.xpose.msra.mxu0 0.0
    %1363 = vmatprep.subr.mxu0 0.0
    %1364 = vmatpush1.xpose.msra.mxu0 0.0
    %1365 = vmatprep.subr.mxu0 0.0
    %1366 = vmatpush1.xpose.msra.mxu0 0.0
    %1367 = vmatprep.subr.mxu0 %v101
    %1368 = vmatpush1.xpose.msra.mxu0 %v100
    %1369 = vmatprep.subr.mxu0 %v93
    %1370 = vmatpush1.xpose.msra.mxu0 %v92
    %1371 = vmatprep.subr.mxu0 0.0
    %1372 = vmatpush2.xpose.msra.mxu0 0.0
    %1373 = vmatprep.subr.mxu0 0.0
    %1374 = vmatpush2.xpose.msra.mxu0 0.0
    %1375 = vmatprep.subr.mxu0 0.0
    %1376 = vmatpush2.xpose.msra.mxu0 0.0
    %1377 = vmatprep.subr.mxu0 0.0
    %1378 = vmatpush2.xpose.msra.mxu0 0.0
    %1379 = vmatprep.subr.mxu0 0.0
    %1380 = vmatpush2.xpose.msra.mxu0 0.0
    %1381 = vmatprep.subr.mxu0 0.0
    %1382 = vmatpush2.xpose.msra.mxu0 0.0
    %1383 = vmatprep.subr.mxu0 0.0
    %1384 = vmatpush2.xpose.msra.mxu0 0.0
    %1385 = vmatprep.subr.mxu0 0.0
    %1386 = vmatpush2.xpose.msra.mxu0 0.0
    %1387 = vmatprep.subr.mxu0 0.0
    %1388 = vmatpush2.xpose.msra.mxu0 0.0
    %1389 = vmatprep.subr.mxu0 0.0
    %1390 = vmatpush2.xpose.msra.mxu0 0.0
    %1391 = vmatprep.subr.mxu0 0.0
    %1392 = vmatpush2.xpose.msra.mxu0 0.0
    %1393 = vmatprep.subr.mxu0 0.0
    %1394 = vmatpush2.xpose.msra.mxu0 0.0
    %1395 = vmatprep.subr.mxu0 0.0
    %1396 = vmatpush2.xpose.msra.mxu0 0.0
    %1397 = vmatprep.subr.mxu0 0.0
    %1398 = vmatpush2.xpose.msra.mxu0 0.0
    %1399 = vmatprep.subr.mxu0 0.0
    %1400 = vmatpush2.xpose.msra.mxu0 0.0
    %1401 = vmatprep.subr.mxu0 0.0
    %1402 = vmatpush2.xpose.msra.mxu0 0.0
    %1403 = vmatprep.mubr.f32.mxu0 %v93
    %1404 = vmatmul.mubr.f32.gmra.mxu0 %v92
    %v1405 = vpop.f32.mrf.mxu0
    %v1406 = vadd.f32 %v1331, %v1405
    %v1407 = vpop.f32.mrf.mxu0
    %1408 = vmatprep.mubr.f32.mxu0 %v101
    %1409 = vmatmul.mubr.f32.gmra.mxu0 %v100
    %v1410 = vpop.f32.mrf.mxu0
    %v1411 = vadd.f32 %v1336, %v1410
    %v1412 = vpop.f32.mrf.mxu0
    %1413 = vdwg.mxu0
    %1414 = vmatprep.subr.mxu0 0.0
    %1415 = vmatpush1.xpose.msra.mxu0 0.0
    %1416 = vmatprep.subr.mxu0 0.0
    %1417 = vmatpush1.xpose.msra.mxu0 0.0
    %1418 = vmatprep.subr.mxu0 0.0
    %1419 = vmatpush1.xpose.msra.mxu0 0.0
    %1420 = vmatprep.subr.mxu0 0.0
    %1421 = vmatpush1.xpose.msra.mxu0 0.0
    %1422 = vmatprep.subr.mxu0 0.0
    %1423 = vmatpush1.xpose.msra.mxu0 0.0
    %1424 = vmatprep.subr.mxu0 0.0
    %1425 = vmatpush1.xpose.msra.mxu0 0.0
    %1426 = vmatprep.subr.mxu0 0.0
    %1427 = vmatpush1.xpose.msra.mxu0 0.0
    %1428 = vmatprep.subr.mxu0 0.0
    %1429 = vmatpush1.xpose.msra.mxu0 0.0
    %1430 = vmatprep.subr.mxu0 0.0
    %1431 = vmatpush1.xpose.msra.mxu0 0.0
    %1432 = vmatprep.subr.mxu0 0.0
    %1433 = vmatpush1.xpose.msra.mxu0 0.0
    %1434 = vmatprep.subr.mxu0 0.0
    %1435 = vmatpush1.xpose.msra.mxu0 0.0
    %1436 = vmatprep.subr.mxu0 0.0
    %1437 = vmatpush1.xpose.msra.mxu0 0.0
    %1438 = vmatprep.subr.mxu0 0.0
    %1439 = vmatpush1.xpose.msra.mxu0 0.0
    %1440 = vmatprep.subr.mxu0 0.0
    %1441 = vmatpush1.xpose.msra.mxu0 0.0
    %1442 = vmatprep.subr.mxu0 %v207
    %1443 = vmatpush1.xpose.msra.mxu0 %v206
    %1444 = vmatprep.subr.mxu0 %v199
    %1445 = vmatpush1.xpose.msra.mxu0 %v198
    %1446 = vmatprep.subr.mxu0 0.0
    %1447 = vmatpush2.xpose.msra.mxu0 0.0
    %1448 = vmatprep.subr.mxu0 0.0
    %1449 = vmatpush2.xpose.msra.mxu0 0.0
    %1450 = vmatprep.subr.mxu0 0.0
    %1451 = vmatpush2.xpose.msra.mxu0 0.0
    %1452 = vmatprep.subr.mxu0 0.0
    %1453 = vmatpush2.xpose.msra.mxu0 0.0
    %1454 = vmatprep.subr.mxu0 0.0
    %1455 = vmatpush2.xpose.msra.mxu0 0.0
    %1456 = vmatprep.subr.mxu0 0.0
    %1457 = vmatpush2.xpose.msra.mxu0 0.0
    %1458 = vmatprep.subr.mxu0 0.0
    %1459 = vmatpush2.xpose.msra.mxu0 0.0
    %1460 = vmatprep.subr.mxu0 0.0
    %1461 = vmatpush2.xpose.msra.mxu0 0.0
    %1462 = vmatprep.subr.mxu0 0.0
    %1463 = vmatpush2.xpose.msra.mxu0 0.0
    %1464 = vmatprep.subr.mxu0 0.0
    %1465 = vmatpush2.xpose.msra.mxu0 0.0
    %1466 = vmatprep.subr.mxu0 0.0
    %1467 = vmatpush2.xpose.msra.mxu0 0.0
    %1468 = vmatprep.subr.mxu0 0.0
    %1469 = vmatpush2.xpose.msra.mxu0 0.0
    %1470 = vmatprep.subr.mxu0 0.0
    %1471 = vmatpush2.xpose.msra.mxu0 0.0
    %1472 = vmatprep.subr.mxu0 0.0
    %1473 = vmatpush2.xpose.msra.mxu0 0.0
    %1474 = vmatprep.subr.mxu0 0.0
    %1475 = vmatpush2.xpose.msra.mxu0 0.0
    %1476 = vmatprep.subr.mxu0 0.0
    %1477 = vmatpush2.xpose.msra.mxu0 0.0
    %1478 = vmatprep.mubr.f32.mxu0 %v199
    %1479 = vmatmul.mubr.f32.gmra.mxu0 %v198
    %v1480 = vpop.f32.mrf.mxu0
    %v1481 = vadd.f32 0.0, %v1480
    %v1482 = vpop.f32.mrf.mxu0
    %1483 = vmatprep.mubr.f32.mxu0 %v207
    %1484 = vmatmul.mubr.f32.gmra.mxu0 %v206
    %v1485 = vpop.f32.mrf.mxu0
    %v1486 = vadd.f32 0.0, %v1485
    %v1487 = vpop.f32.mrf.mxu0
    %1488 = vdwg.mxu0
    %1489 = vmatprep.subr.mxu0 0.0
    %1490 = vmatpush1.xpose.msra.mxu0 0.0
    %1491 = vmatprep.subr.mxu0 0.0
    %1492 = vmatpush1.xpose.msra.mxu0 0.0
    %1493 = vmatprep.subr.mxu0 0.0
    %1494 = vmatpush1.xpose.msra.mxu0 0.0
    %1495 = vmatprep.subr.mxu0 0.0
    %1496 = vmatpush1.xpose.msra.mxu0 0.0
    %1497 = vmatprep.subr.mxu0 0.0
    %1498 = vmatpush1.xpose.msra.mxu0 0.0
    %1499 = vmatprep.subr.mxu0 0.0
    %1500 = vmatpush1.xpose.msra.mxu0 0.0
    %1501 = vmatprep.subr.mxu0 0.0
    %1502 = vmatpush1.xpose.msra.mxu0 0.0
    %1503 = vmatprep.subr.mxu0 0.0
    %1504 = vmatpush1.xpose.msra.mxu0 0.0
    %1505 = vmatprep.subr.mxu0 0.0
    %1506 = vmatpush1.xpose.msra.mxu0 0.0
    %1507 = vmatprep.subr.mxu0 0.0
    %1508 = vmatpush1.xpose.msra.mxu0 0.0
    %1509 = vmatprep.subr.mxu0 0.0
    %1510 = vmatpush1.xpose.msra.mxu0 0.0
    %1511 = vmatprep.subr.mxu0 0.0
    %1512 = vmatpush1.xpose.msra.mxu0 0.0
    %1513 = vmatprep.subr.mxu0 0.0
    %1514 = vmatpush1.xpose.msra.mxu0 0.0
    %1515 = vmatprep.subr.mxu0 0.0
    %1516 = vmatpush1.xpose.msra.mxu0 0.0
    %1517 = vmatprep.subr.mxu0 %v209
    %1518 = vmatpush1.xpose.msra.mxu0 %v208
    %1519 = vmatprep.subr.mxu0 %v201
    %1520 = vmatpush1.xpose.msra.mxu0 %v200
    %1521 = vmatprep.subr.mxu0 0.0
    %1522 = vmatpush2.xpose.msra.mxu0 0.0
    %1523 = vmatprep.subr.mxu0 0.0
    %1524 = vmatpush2.xpose.msra.mxu0 0.0
    %1525 = vmatprep.subr.mxu0 0.0
    %1526 = vmatpush2.xpose.msra.mxu0 0.0
    %1527 = vmatprep.subr.mxu0 0.0
    %1528 = vmatpush2.xpose.msra.mxu0 0.0
    %1529 = vmatprep.subr.mxu0 0.0
    %1530 = vmatpush2.xpose.msra.mxu0 0.0
    %1531 = vmatprep.subr.mxu0 0.0
    %1532 = vmatpush2.xpose.msra.mxu0 0.0
    %1533 = vmatprep.subr.mxu0 0.0
    %1534 = vmatpush2.xpose.msra.mxu0 0.0
    %1535 = vmatprep.subr.mxu0 0.0
    %1536 = vmatpush2.xpose.msra.mxu0 0.0
    %1537 = vmatprep.subr.mxu0 0.0
    %1538 = vmatpush2.xpose.msra.mxu0 0.0
    %1539 = vmatprep.subr.mxu0 0.0
    %1540 = vmatpush2.xpose.msra.mxu0 0.0
    %1541 = vmatprep.subr.mxu0 0.0
    %1542 = vmatpush2.xpose.msra.mxu0 0.0
    %1543 = vmatprep.subr.mxu0 0.0
    %1544 = vmatpush2.xpose.msra.mxu0 0.0
    %1545 = vmatprep.subr.mxu0 0.0
    %1546 = vmatpush2.xpose.msra.mxu0 0.0
    %1547 = vmatprep.subr.mxu0 0.0
    %1548 = vmatpush2.xpose.msra.mxu0 0.0
    %1549 = vmatprep.subr.mxu0 0.0
    %1550 = vmatpush2.xpose.msra.mxu0 0.0
    %1551 = vmatprep.subr.mxu0 0.0
    %1552 = vmatpush2.xpose.msra.mxu0 0.0
    %1553 = vmatprep.mubr.f32.mxu0 %v201
    %1554 = vmatmul.mubr.f32.gmra.mxu0 %v200
    %v1555 = vpop.f32.mrf.mxu0
    %v1556 = vadd.f32 %v1481, %v1555
    %v1557 = vpop.f32.mrf.mxu0
    %1558 = vmatprep.mubr.f32.mxu0 %v209
    %1559 = vmatmul.mubr.f32.gmra.mxu0 %v208
    %v1560 = vpop.f32.mrf.mxu0
    %v1561 = vadd.f32 %v1486, %v1560
    %v1562 = vpop.f32.mrf.mxu0
    %1563 = vdwg.mxu0
    %1564 = vmatprep.subr.mxu0 0.0
    %1565 = vmatpush1.xpose.msra.mxu0 0.0
    %1566 = vmatprep.subr.mxu0 0.0
    %1567 = vmatpush1.xpose.msra.mxu0 0.0
    %1568 = vmatprep.subr.mxu0 0.0
    %1569 = vmatpush1.xpose.msra.mxu0 0.0
    %1570 = vmatprep.subr.mxu0 0.0
    %1571 = vmatpush1.xpose.msra.mxu0 0.0
    %1572 = vmatprep.subr.mxu0 0.0
    %1573 = vmatpush1.xpose.msra.mxu0 0.0
    %1574 = vmatprep.subr.mxu0 0.0
    %1575 = vmatpush1.xpose.msra.mxu0 0.0
    %1576 = vmatprep.subr.mxu0 0.0
    %1577 = vmatpush1.xpose.msra.mxu0 0.0
    %1578 = vmatprep.subr.mxu0 0.0
    %1579 = vmatpush1.xpose.msra.mxu0 0.0
    %1580 = vmatprep.subr.mxu0 0.0
    %1581 = vmatpush1.xpose.msra.mxu0 0.0
    %1582 = vmatprep.subr.mxu0 0.0
    %1583 = vmatpush1.xpose.msra.mxu0 0.0
    %1584 = vmatprep.subr.mxu0 0.0
    %1585 = vmatpush1.xpose.msra.mxu0 0.0
    %1586 = vmatprep.subr.mxu0 0.0
    %1587 = vmatpush1.xpose.msra.mxu0 0.0
    %1588 = vmatprep.subr.mxu0 0.0
    %1589 = vmatpush1.xpose.msra.mxu0 0.0
    %1590 = vmatprep.subr.mxu0 0.0
    %1591 = vmatpush1.xpose.msra.mxu0 0.0
    %1592 = vmatprep.subr.mxu0 %v211
    %1593 = vmatpush1.xpose.msra.mxu0 %v210
    %1594 = vmatprep.subr.mxu0 %v203
    %1595 = vmatpush1.xpose.msra.mxu0 %v202
    %1596 = vmatprep.subr.mxu0 0.0
    %1597 = vmatpush2.xpose.msra.mxu0 0.0
    %1598 = vmatprep.subr.mxu0 0.0
    %1599 = vmatpush2.xpose.msra.mxu0 0.0
    %1600 = vmatprep.subr.mxu0 0.0
    %1601 = vmatpush2.xpose.msra.mxu0 0.0
    %1602 = vmatprep.subr.mxu0 0.0
    %1603 = vmatpush2.xpose.msra.mxu0 0.0
    %1604 = vmatprep.subr.mxu0 0.0
    %1605 = vmatpush2.xpose.msra.mxu0 0.0
    %1606 = vmatprep.subr.mxu0 0.0
    %1607 = vmatpush2.xpose.msra.mxu0 0.0
    %1608 = vmatprep.subr.mxu0 0.0
    %1609 = vmatpush2.xpose.msra.mxu0 0.0
    %1610 = vmatprep.subr.mxu0 0.0
    %1611 = vmatpush2.xpose.msra.mxu0 0.0
    %1612 = vmatprep.subr.mxu0 0.0
    %1613 = vmatpush2.xpose.msra.mxu0 0.0
    %1614 = vmatprep.subr.mxu0 0.0
    %1615 = vmatpush2.xpose.msra.mxu0 0.0
    %1616 = vmatprep.subr.mxu0 0.0
    %1617 = vmatpush2.xpose.msra.mxu0 0.0
    %1618 = vmatprep.subr.mxu0 0.0
    %1619 = vmatpush2.xpose.msra.mxu0 0.0
    %1620 = vmatprep.subr.mxu0 0.0
    %1621 = vmatpush2.xpose.msra.mxu0 0.0
    %1622 = vmatprep.subr.mxu0 0.0
    %1623 = vmatpush2.xpose.msra.mxu0 0.0
    %1624 = vmatprep.subr.mxu0 0.0
    %1625 = vmatpush2.xpose.msra.mxu0 0.0
    %1626 = vmatprep.subr.mxu0 0.0
    %1627 = vmatpush2.xpose.msra.mxu0 0.0
    %1628 = vmatprep.mubr.f32.mxu0 %v203
    %1629 = vmatmul.mubr.f32.gmra.mxu0 %v202
    %v1630 = vpop.f32.mrf.mxu0
    %v1631 = vadd.f32 %v1556, %v1630
    %v1632 = vpop.f32.mrf.mxu0
    %1633 = vmatprep.mubr.f32.mxu0 %v211
    %1634 = vmatmul.mubr.f32.gmra.mxu0 %v210
    %v1635 = vpop.f32.mrf.mxu0
    %v1636 = vadd.f32 %v1561, %v1635
    %v1637 = vpop.f32.mrf.mxu0
    %1638 = vdwg.mxu0
    %1639 = vmatprep.subr.mxu0 0.0
    %1640 = vmatpush1.xpose.msra.mxu0 0.0
    %1641 = vmatprep.subr.mxu0 0.0
    %1642 = vmatpush1.xpose.msra.mxu0 0.0
    %1643 = vmatprep.subr.mxu0 0.0
    %1644 = vmatpush1.xpose.msra.mxu0 0.0
    %1645 = vmatprep.subr.mxu0 0.0
    %1646 = vmatpush1.xpose.msra.mxu0 0.0
    %1647 = vmatprep.subr.mxu0 0.0
    %1648 = vmatpush1.xpose.msra.mxu0 0.0
    %1649 = vmatprep.subr.mxu0 0.0
    %1650 = vmatpush1.xpose.msra.mxu0 0.0
    %1651 = vmatprep.subr.mxu0 0.0
    %1652 = vmatpush1.xpose.msra.mxu0 0.0
    %1653 = vmatprep.subr.mxu0 0.0
    %1654 = vmatpush1.xpose.msra.mxu0 0.0
    %1655 = vmatprep.subr.mxu0 0.0
    %1656 = vmatpush1.xpose.msra.mxu0 0.0
    %1657 = vmatprep.subr.mxu0 0.0
    %1658 = vmatpush1.xpose.msra.mxu0 0.0
    %1659 = vmatprep.subr.mxu0 0.0
    %1660 = vmatpush1.xpose.msra.mxu0 0.0
    %1661 = vmatprep.subr.mxu0 0.0
    %1662 = vmatpush1.xpose.msra.mxu0 0.0
    %1663 = vmatprep.subr.mxu0 0.0
    %1664 = vmatpush1.xpose.msra.mxu0 0.0
    %1665 = vmatprep.subr.mxu0 0.0
    %1666 = vmatpush1.xpose.msra.mxu0 0.0
    %1667 = vmatprep.subr.mxu0 %v213
    %1668 = vmatpush1.xpose.msra.mxu0 %v212
    %1669 = vmatprep.subr.mxu0 %v205
    %1670 = vmatpush1.xpose.msra.mxu0 %v204
    %1671 = vmatprep.subr.mxu0 0.0
    %1672 = vmatpush2.xpose.msra.mxu0 0.0
    %1673 = vmatprep.subr.mxu0 0.0
    %1674 = vmatpush2.xpose.msra.mxu0 0.0
    %1675 = vmatprep.subr.mxu0 0.0
    %1676 = vmatpush2.xpose.msra.mxu0 0.0
    %1677 = vmatprep.subr.mxu0 0.0
    %1678 = vmatpush2.xpose.msra.mxu0 0.0
    %1679 = vmatprep.subr.mxu0 0.0
    %1680 = vmatpush2.xpose.msra.mxu0 0.0
    %1681 = vmatprep.subr.mxu0 0.0
    %1682 = vmatpush2.xpose.msra.mxu0 0.0
    %1683 = vmatprep.subr.mxu0 0.0
    %1684 = vmatpush2.xpose.msra.mxu0 0.0
    %1685 = vmatprep.subr.mxu0 0.0
    %1686 = vmatpush2.xpose.msra.mxu0 0.0
    %1687 = vmatprep.subr.mxu0 0.0
    %1688 = vmatpush2.xpose.msra.mxu0 0.0
    %1689 = vmatprep.subr.mxu0 0.0
    %1690 = vmatpush2.xpose.msra.mxu0 0.0
    %1691 = vmatprep.subr.mxu0 0.0
    %1692 = vmatpush2.xpose.msra.mxu0 0.0
    %1693 = vmatprep.subr.mxu0 0.0
    %1694 = vmatpush2.xpose.msra.mxu0 0.0
    %1695 = vmatprep.subr.mxu0 0.0
    %1696 = vmatpush2.xpose.msra.mxu0 0.0
    %1697 = vmatprep.subr.mxu0 0.0
    %1698 = vmatpush2.xpose.msra.mxu0 0.0
    %1699 = vmatprep.subr.mxu0 0.0
    %1700 = vmatpush2.xpose.msra.mxu0 0.0
    %1701 = vmatprep.subr.mxu0 0.0
    %1702 = vmatpush2.xpose.msra.mxu0 0.0
    %1703 = vmatprep.mubr.f32.mxu0 %v205
    %1704 = vmatmul.mubr.f32.gmra.mxu0 %v204
    %v1705 = vpop.f32.mrf.mxu0
    %v1706 = vadd.f32 %v1631, %v1705
    %v1707 = vpop.f32.mrf.mxu0
    %1708 = vmatprep.mubr.f32.mxu0 %v213
    %1709 = vmatmul.mubr.f32.gmra.mxu0 %v212
    %v1710 = vpop.f32.mrf.mxu0
    %v1711 = vadd.f32 %v1636, %v1710
    %v1712 = vpop.f32.mrf.mxu0
    %1713 = vdwg.mxu0
    %1714 = vmatprep.subr.mxu0 0.0
    %1715 = vmatpush1.xpose.msra.mxu0 0.0
    %1716 = vmatprep.subr.mxu0 0.0
    %1717 = vmatpush1.xpose.msra.mxu0 0.0
    %1718 = vmatprep.subr.mxu0 0.0
    %1719 = vmatpush1.xpose.msra.mxu0 0.0
    %1720 = vmatprep.subr.mxu0 0.0
    %1721 = vmatpush1.xpose.msra.mxu0 0.0
    %1722 = vmatprep.subr.mxu0 0.0
    %1723 = vmatpush1.xpose.msra.mxu0 0.0
    %1724 = vmatprep.subr.mxu0 0.0
    %1725 = vmatpush1.xpose.msra.mxu0 0.0
    %1726 = vmatprep.subr.mxu0 0.0
    %1727 = vmatpush1.xpose.msra.mxu0 0.0
    %1728 = vmatprep.subr.mxu0 0.0
    %1729 = vmatpush1.xpose.msra.mxu0 0.0
    %1730 = vmatprep.subr.mxu0 0.0
    %1731 = vmatpush1.xpose.msra.mxu0 0.0
    %1732 = vmatprep.subr.mxu0 0.0
    %1733 = vmatpush1.xpose.msra.mxu0 0.0
    %1734 = vmatprep.subr.mxu0 0.0
    %1735 = vmatpush1.xpose.msra.mxu0 0.0
    %1736 = vmatprep.subr.mxu0 0.0
    %1737 = vmatpush1.xpose.msra.mxu0 0.0
    %1738 = vmatprep.subr.mxu0 0.0
    %1739 = vmatpush1.xpose.msra.mxu0 0.0
    %1740 = vmatprep.subr.mxu0 0.0
    %1741 = vmatpush1.xpose.msra.mxu0 0.0
    %1742 = vmatprep.subr.mxu0 %v111
    %1743 = vmatpush1.xpose.msra.mxu0 %v110
    %1744 = vmatprep.subr.mxu0 %v103
    %1745 = vmatpush1.xpose.msra.mxu0 %v102
    %1746 = vmatprep.subr.mxu0 0.0
    %1747 = vmatpush2.xpose.msra.mxu0 0.0
    %1748 = vmatprep.subr.mxu0 0.0
    %1749 = vmatpush2.xpose.msra.mxu0 0.0
    %1750 = vmatprep.subr.mxu0 0.0
    %1751 = vmatpush2.xpose.msra.mxu0 0.0
    %1752 = vmatprep.subr.mxu0 0.0
    %1753 = vmatpush2.xpose.msra.mxu0 0.0
    %1754 = vmatprep.subr.mxu0 0.0
    %1755 = vmatpush2.xpose.msra.mxu0 0.0
    %1756 = vmatprep.subr.mxu0 0.0
    %1757 = vmatpush2.xpose.msra.mxu0 0.0
    %1758 = vmatprep.subr.mxu0 0.0
    %1759 = vmatpush2.xpose.msra.mxu0 0.0
    %1760 = vmatprep.subr.mxu0 0.0
    %1761 = vmatpush2.xpose.msra.mxu0 0.0
    %1762 = vmatprep.subr.mxu0 0.0
    %1763 = vmatpush2.xpose.msra.mxu0 0.0
    %1764 = vmatprep.subr.mxu0 0.0
    %1765 = vmatpush2.xpose.msra.mxu0 0.0
    %1766 = vmatprep.subr.mxu0 0.0
    %1767 = vmatpush2.xpose.msra.mxu0 0.0
    %1768 = vmatprep.subr.mxu0 0.0
    %1769 = vmatpush2.xpose.msra.mxu0 0.0
    %1770 = vmatprep.subr.mxu0 0.0
    %1771 = vmatpush2.xpose.msra.mxu0 0.0
    %1772 = vmatprep.subr.mxu0 0.0
    %1773 = vmatpush2.xpose.msra.mxu0 0.0
    %1774 = vmatprep.subr.mxu0 0.0
    %1775 = vmatpush2.xpose.msra.mxu0 0.0
    %1776 = vmatprep.subr.mxu0 0.0
    %1777 = vmatpush2.xpose.msra.mxu0 0.0
    %1778 = vmatprep.mubr.f32.mxu0 %v103
    %1779 = vmatmul.mubr.f32.gmra.mxu0 %v102
    %v1780 = vpop.f32.mrf.mxu0
    %v1781 = vadd.f32 %v1706, %v1780
    %v1782 = vpop.f32.mrf.mxu0
    %1783 = vmatprep.mubr.f32.mxu0 %v111
    %1784 = vmatmul.mubr.f32.gmra.mxu0 %v110
    %v1785 = vpop.f32.mrf.mxu0
    %v1786 = vadd.f32 %v1711, %v1785
    %v1787 = vpop.f32.mrf.mxu0
    %1788 = vdwg.mxu0
    %1789 = vmatprep.subr.mxu0 0.0
    %1790 = vmatpush1.xpose.msra.mxu0 0.0
    %1791 = vmatprep.subr.mxu0 0.0
    %1792 = vmatpush1.xpose.msra.mxu0 0.0
    %1793 = vmatprep.subr.mxu0 0.0
    %1794 = vmatpush1.xpose.msra.mxu0 0.0
    %1795 = vmatprep.subr.mxu0 0.0
    %1796 = vmatpush1.xpose.msra.mxu0 0.0
    %1797 = vmatprep.subr.mxu0 0.0
    %1798 = vmatpush1.xpose.msra.mxu0 0.0
    %1799 = vmatprep.subr.mxu0 0.0
    %1800 = vmatpush1.xpose.msra.mxu0 0.0
    %1801 = vmatprep.subr.mxu0 0.0
    %1802 = vmatpush1.xpose.msra.mxu0 0.0
    %1803 = vmatprep.subr.mxu0 0.0
    %1804 = vmatpush1.xpose.msra.mxu0 0.0
    %1805 = vmatprep.subr.mxu0 0.0
    %1806 = vmatpush1.xpose.msra.mxu0 0.0
    %1807 = vmatprep.subr.mxu0 0.0
    %1808 = vmatpush1.xpose.msra.mxu0 0.0
    %1809 = vmatprep.subr.mxu0 0.0
    %1810 = vmatpush1.xpose.msra.mxu0 0.0
    %1811 = vmatprep.subr.mxu0 0.0
    %1812 = vmatpush1.xpose.msra.mxu0 0.0
    %1813 = vmatprep.subr.mxu0 0.0
    %1814 = vmatpush1.xpose.msra.mxu0 0.0
    %1815 = vmatprep.subr.mxu0 0.0
    %1816 = vmatpush1.xpose.msra.mxu0 0.0
    %1817 = vmatprep.subr.mxu0 %v113
    %1818 = vmatpush1.xpose.msra.mxu0 %v112
    %1819 = vmatprep.subr.mxu0 %v105
    %1820 = vmatpush1.xpose.msra.mxu0 %v104
    %1821 = vmatprep.subr.mxu0 0.0
    %1822 = vmatpush2.xpose.msra.mxu0 0.0
    %1823 = vmatprep.subr.mxu0 0.0
    %1824 = vmatpush2.xpose.msra.mxu0 0.0
    %1825 = vmatprep.subr.mxu0 0.0
    %1826 = vmatpush2.xpose.msra.mxu0 0.0
    %1827 = vmatprep.subr.mxu0 0.0
    %1828 = vmatpush2.xpose.msra.mxu0 0.0
    %1829 = vmatprep.subr.mxu0 0.0
    %1830 = vmatpush2.xpose.msra.mxu0 0.0
    %1831 = vmatprep.subr.mxu0 0.0
    %1832 = vmatpush2.xpose.msra.mxu0 0.0
    %1833 = vmatprep.subr.mxu0 0.0
    %1834 = vmatpush2.xpose.msra.mxu0 0.0
    %1835 = vmatprep.subr.mxu0 0.0
    %1836 = vmatpush2.xpose.msra.mxu0 0.0
    %1837 = vmatprep.subr.mxu0 0.0
    %1838 = vmatpush2.xpose.msra.mxu0 0.0
    %1839 = vmatprep.subr.mxu0 0.0
    %1840 = vmatpush2.xpose.msra.mxu0 0.0
    %1841 = vmatprep.subr.mxu0 0.0
    %1842 = vmatpush2.xpose.msra.mxu0 0.0
    %1843 = vmatprep.subr.mxu0 0.0
    %1844 = vmatpush2.xpose.msra.mxu0 0.0
    %1845 = vmatprep.subr.mxu0 0.0
    %1846 = vmatpush2.xpose.msra.mxu0 0.0
    %1847 = vmatprep.subr.mxu0 0.0
    %1848 = vmatpush2.xpose.msra.mxu0 0.0
    %1849 = vmatprep.subr.mxu0 0.0
    %1850 = vmatpush2.xpose.msra.mxu0 0.0
    %1851 = vmatprep.subr.mxu0 0.0
    %1852 = vmatpush2.xpose.msra.mxu0 0.0
    %1853 = vmatprep.mubr.f32.mxu0 %v105
    %1854 = vmatmul.mubr.f32.gmra.mxu0 %v104
    %v1855 = vpop.f32.mrf.mxu0
    %v1856 = vadd.f32 %v1781, %v1855
    %v1857 = vpop.f32.mrf.mxu0
    %1858 = vmatprep.mubr.f32.mxu0 %v113
    %1859 = vmatmul.mubr.f32.gmra.mxu0 %v112
    %v1860 = vpop.f32.mrf.mxu0
    %v1861 = vadd.f32 %v1786, %v1860
    %v1862 = vpop.f32.mrf.mxu0
    %1863 = vdwg.mxu0
    %1864 = vmatprep.subr.mxu0 0.0
    %1865 = vmatpush1.xpose.msra.mxu0 0.0
    %1866 = vmatprep.subr.mxu0 0.0
    %1867 = vmatpush1.xpose.msra.mxu0 0.0
    %1868 = vmatprep.subr.mxu0 0.0
    %1869 = vmatpush1.xpose.msra.mxu0 0.0
    %1870 = vmatprep.subr.mxu0 0.0
    %1871 = vmatpush1.xpose.msra.mxu0 0.0
    %1872 = vmatprep.subr.mxu0 0.0
    %1873 = vmatpush1.xpose.msra.mxu0 0.0
    %1874 = vmatprep.subr.mxu0 0.0
    %1875 = vmatpush1.xpose.msra.mxu0 0.0
    %1876 = vmatprep.subr.mxu0 0.0
    %1877 = vmatpush1.xpose.msra.mxu0 0.0
    %1878 = vmatprep.subr.mxu0 0.0
    %1879 = vmatpush1.xpose.msra.mxu0 0.0
    %1880 = vmatprep.subr.mxu0 0.0
    %1881 = vmatpush1.xpose.msra.mxu0 0.0
    %1882 = vmatprep.subr.mxu0 0.0
    %1883 = vmatpush1.xpose.msra.mxu0 0.0
    %1884 = vmatprep.subr.mxu0 0.0
    %1885 = vmatpush1.xpose.msra.mxu0 0.0
    %1886 = vmatprep.subr.mxu0 0.0
    %1887 = vmatpush1.xpose.msra.mxu0 0.0
    %1888 = vmatprep.subr.mxu0 0.0
    %1889 = vmatpush1.xpose.msra.mxu0 0.0
    %1890 = vmatprep.subr.mxu0 0.0
    %1891 = vmatpush1.xpose.msra.mxu0 0.0
    %1892 = vmatprep.subr.mxu0 %v115
    %1893 = vmatpush1.xpose.msra.mxu0 %v114
    %1894 = vmatprep.subr.mxu0 %v107
    %1895 = vmatpush1.xpose.msra.mxu0 %v106
    %1896 = vmatprep.subr.mxu0 0.0
    %1897 = vmatpush2.xpose.msra.mxu0 0.0
    %1898 = vmatprep.subr.mxu0 0.0
    %1899 = vmatpush2.xpose.msra.mxu0 0.0
    %1900 = vmatprep.subr.mxu0 0.0
    %1901 = vmatpush2.xpose.msra.mxu0 0.0
    %1902 = vmatprep.subr.mxu0 0.0
    %1903 = vmatpush2.xpose.msra.mxu0 0.0
    %1904 = vmatprep.subr.mxu0 0.0
    %1905 = vmatpush2.xpose.msra.mxu0 0.0
    %1906 = vmatprep.subr.mxu0 0.0
    %1907 = vmatpush2.xpose.msra.mxu0 0.0
    %1908 = vmatprep.subr.mxu0 0.0
    %1909 = vmatpush2.xpose.msra.mxu0 0.0
    %1910 = vmatprep.subr.mxu0 0.0
    %1911 = vmatpush2.xpose.msra.mxu0 0.0
    %1912 = vmatprep.subr.mxu0 0.0
    %1913 = vmatpush2.xpose.msra.mxu0 0.0
    %1914 = vmatprep.subr.mxu0 0.0
    %1915 = vmatpush2.xpose.msra.mxu0 0.0
    %1916 = vmatprep.subr.mxu0 0.0
    %1917 = vmatpush2.xpose.msra.mxu0 0.0
    %1918 = vmatprep.subr.mxu0 0.0
    %1919 = vmatpush2.xpose.msra.mxu0 0.0
    %1920 = vmatprep.subr.mxu0 0.0
    %1921 = vmatpush2.xpose.msra.mxu0 0.0
    %1922 = vmatprep.subr.mxu0 0.0
    %1923 = vmatpush2.xpose.msra.mxu0 0.0
    %1924 = vmatprep.subr.mxu0 0.0
    %1925 = vmatpush2.xpose.msra.mxu0 0.0
    %1926 = vmatprep.subr.mxu0 0.0
    %1927 = vmatpush2.xpose.msra.mxu0 0.0
    %1928 = vmatprep.mubr.f32.mxu0 %v107
    %1929 = vmatmul.mubr.f32.gmra.mxu0 %v106
    %v1930 = vpop.f32.mrf.mxu0
    %v1931 = vadd.f32 %v1856, %v1930
    %v1932 = vpop.f32.mrf.mxu0
    %1933 = vmatprep.mubr.f32.mxu0 %v115
    %1934 = vmatmul.mubr.f32.gmra.mxu0 %v114
    %v1935 = vpop.f32.mrf.mxu0
    %v1936 = vadd.f32 %v1861, %v1935
    %v1937 = vpop.f32.mrf.mxu0
    %1938 = vdwg.mxu0
    %1939 = vmatprep.subr.mxu0 0.0
    %1940 = vmatpush1.xpose.msra.mxu0 0.0
    %1941 = vmatprep.subr.mxu0 0.0
    %1942 = vmatpush1.xpose.msra.mxu0 0.0
    %1943 = vmatprep.subr.mxu0 0.0
    %1944 = vmatpush1.xpose.msra.mxu0 0.0
    %1945 = vmatprep.subr.mxu0 0.0
    %1946 = vmatpush1.xpose.msra.mxu0 0.0
    %1947 = vmatprep.subr.mxu0 0.0
    %1948 = vmatpush1.xpose.msra.mxu0 0.0
    %1949 = vmatprep.subr.mxu0 0.0
    %1950 = vmatpush1.xpose.msra.mxu0 0.0
    %1951 = vmatprep.subr.mxu0 0.0
    %1952 = vmatpush1.xpose.msra.mxu0 0.0
    %1953 = vmatprep.subr.mxu0 0.0
    %1954 = vmatpush1.xpose.msra.mxu0 0.0
    %1955 = vmatprep.subr.mxu0 0.0
    %1956 = vmatpush1.xpose.msra.mxu0 0.0
    %1957 = vmatprep.subr.mxu0 0.0
    %1958 = vmatpush1.xpose.msra.mxu0 0.0
    %1959 = vmatprep.subr.mxu0 0.0
    %1960 = vmatpush1.xpose.msra.mxu0 0.0
    %1961 = vmatprep.subr.mxu0 0.0
    %1962 = vmatpush1.xpose.msra.mxu0 0.0
    %1963 = vmatprep.subr.mxu0 0.0
    %1964 = vmatpush1.xpose.msra.mxu0 0.0
    %1965 = vmatprep.subr.mxu0 0.0
    %1966 = vmatpush1.xpose.msra.mxu0 0.0
    %1967 = vmatprep.subr.mxu0 %v117
    %1968 = vmatpush1.xpose.msra.mxu0 %v116
    %1969 = vmatprep.subr.mxu0 %v109
    %1970 = vmatpush1.xpose.msra.mxu0 %v108
    %1971 = vmatprep.subr.mxu0 0.0
    %1972 = vmatpush2.xpose.msra.mxu0 0.0
    %1973 = vmatprep.subr.mxu0 0.0
    %1974 = vmatpush2.xpose.msra.mxu0 0.0
    %1975 = vmatprep.subr.mxu0 0.0
    %1976 = vmatpush2.xpose.msra.mxu0 0.0
    %1977 = vmatprep.subr.mxu0 0.0
    %1978 = vmatpush2.xpose.msra.mxu0 0.0
    %1979 = vmatprep.subr.mxu0 0.0
    %1980 = vmatpush2.xpose.msra.mxu0 0.0
    %1981 = vmatprep.subr.mxu0 0.0
    %1982 = vmatpush2.xpose.msra.mxu0 0.0
    %1983 = vmatprep.subr.mxu0 0.0
    %1984 = vmatpush2.xpose.msra.mxu0 0.0
    %1985 = vmatprep.subr.mxu0 0.0
    %1986 = vmatpush2.xpose.msra.mxu0 0.0
    %1987 = vmatprep.subr.mxu0 0.0
    %1988 = vmatpush2.xpose.msra.mxu0 0.0
    %1989 = vmatprep.subr.mxu0 0.0
    %1990 = vmatpush2.xpose.msra.mxu0 0.0
    %1991 = vmatprep.subr.mxu0 0.0
    %1992 = vmatpush2.xpose.msra.mxu0 0.0
    %1993 = vmatprep.subr.mxu0 0.0
    %1994 = vmatpush2.xpose.msra.mxu0 0.0
    %1995 = vmatprep.subr.mxu0 0.0
    %1996 = vmatpush2.xpose.msra.mxu0 0.0
    %1997 = vmatprep.subr.mxu0 0.0
    %1998 = vmatpush2.xpose.msra.mxu0 0.0
    %1999 = vmatprep.subr.mxu0 0.0
    %2000 = vmatpush2.xpose.msra.mxu0 0.0
    %2001 = vmatprep.subr.mxu0 0.0
    %2002 = vmatpush2.xpose.msra.mxu0 0.0
    %2003 = vmatprep.mubr.f32.mxu0 %v109
    %2004 = vmatmul.mubr.f32.gmra.mxu0 %v108
    %v2005 = vpop.f32.mrf.mxu0
    %v2006 = vadd.f32 %v1931, %v2005
    %v2007 = vpop.f32.mrf.mxu0
    %2008 = vmatprep.mubr.f32.mxu0 %v117
    %2009 = vmatmul.mubr.f32.gmra.mxu0 %v116
    %v2010 = vpop.f32.mrf.mxu0
    %v2011 = vadd.f32 %v1936, %v2010
    %v2012 = vpop.f32.mrf.mxu0
    %2013 = vdwg.mxu0
    %v2014 = vadd.f32 %v182, %v190
    %v2015 = vrot.slane %v2014, 4
    %v2016 = vadd.f32 %v2014, %v2015
    %v2017 = vrot.slane %v2016, 2
    %v2018 = vadd.f32 %v2016, %v2017
    %v2019 = vrot.slane %v2018, 1
    %v2020 = vadd.f32 %v2018, %v2019
    %v2021 = vadd.f32 %v183, %v191
    %v2022 = vrot.slane %v2021, 4
    %v2023 = vadd.f32 %v2021, %v2022
    %v2024 = vrot.slane %v2023, 2
    %v2025 = vadd.f32 %v2023, %v2024
    %v2026 = vrot.slane %v2025, 1
    %v2027 = vadd.f32 %v2025, %v2026
    %v2028 = vadd.f32 %v184, %v192
    %v2029 = vrot.slane %v2028, 4
    %v2030 = vadd.f32 %v2028, %v2029
    %v2031 = vrot.slane %v2030, 2
    %v2032 = vadd.f32 %v2030, %v2031
    %v2033 = vrot.slane %v2032, 1
    %v2034 = vadd.f32 %v2032, %v2033
    %v2035 = vadd.f32 %v185, %v193
    %v2036 = vrot.slane %v2035, 4
    %v2037 = vadd.f32 %v2035, %v2036
    %v2038 = vrot.slane %v2037, 2
    %v2039 = vadd.f32 %v2037, %v2038
    %v2040 = vrot.slane %v2039, 1
    %v2041 = vadd.f32 %v2039, %v2040
    %v2042 = vadd.f32 %v186, %v194
    %v2043 = vrot.slane %v2042, 4
    %v2044 = vadd.f32 %v2042, %v2043
    %v2045 = vrot.slane %v2044, 2
    %v2046 = vadd.f32 %v2044, %v2045
    %v2047 = vrot.slane %v2046, 1
    %v2048 = vadd.f32 %v2046, %v2047
    %v2049 = vadd.f32 %v187, %v195
    %v2050 = vrot.slane %v2049, 4
    %v2051 = vadd.f32 %v2049, %v2050
    %v2052 = vrot.slane %v2051, 2
    %v2053 = vadd.f32 %v2051, %v2052
    %v2054 = vrot.slane %v2053, 1
    %v2055 = vadd.f32 %v2053, %v2054
    %v2056 = vadd.f32 %v188, %v196
    %v2057 = vrot.slane %v2056, 4
    %v2058 = vadd.f32 %v2056, %v2057
    %v2059 = vrot.slane %v2058, 2
    %v2060 = vadd.f32 %v2058, %v2059
    %v2061 = vrot.slane %v2060, 1
    %v2062 = vadd.f32 %v2060, %v2061
    %v2063 = vadd.f32 %v189, %v197
    %v2064 = vrot.slane %v2063, 4
    %v2065 = vadd.f32 %v2063, %v2064
    %v2066 = vrot.slane %v2065, 2
    %v2067 = vadd.f32 %v2065, %v2066
    %v2068 = vrot.slane %v2067, 1
    %v2069 = vadd.f32 %v2067, %v2068
    %v2070 = vadd.f32 %v174, %v2020
    %v2071 = vadd.f32 %v175, %v2027
    %v2072 = vadd.f32 %v176, %v2034
    %v2073 = vadd.f32 %v177, %v2041
    %v2074 = vadd.f32 %v178, %v2048
    %v2075 = vadd.f32 %v179, %v2055
    %v2076 = vadd.f32 %v180, %v2062
    %v2077 = vadd.f32 %v181, %v2069
    %v2078 = vld [vmem:[#allocation2] sm:$0xff]
    %v2079 = vld [vmem:[#allocation2 + $0x8] sm:$0xff]
    %v2080 = vadd.f32 %v2078, %v806
    %v2081 = vadd.f32 %v2079, %v811
    %vm2082 = vcmask 130048
    %2083 = vst.msk [vmem:[#allocation2] sm:$0xff] %vm2082, %v2080
    %2084 = vst.msk [vmem:[#allocation2 + $0x8] sm:$0xff] %vm2082, %v2081
    %v2085 = vld [vmem:[#allocation3] sm:$0xff]
    %v2086 = vld [vmem:[#allocation3 + $0x8] sm:$0xff]
    %v2087 = vadd.f32 %v2085, %v1406
    %v2088 = vadd.f32 %v2086, %v1411
    %2089 = vst.msk [vmem:[#allocation3] sm:$0xff] %vm2082, %v2087
    %2090 = vst.msk [vmem:[#allocation3 + $0x8] sm:$0xff] %vm2082, %v2088
    %v2091 = vld [vmem:[#allocation4] sm:$0xff]
    %v2092 = vld [vmem:[#allocation4 + $0x8] sm:$0xff]
    %v2093 = vadd.f32 %v2091, %v2006
    %v2094 = vadd.f32 %v2092, %v2011
    %2095 = vst.msk [vmem:[#allocation4] sm:$0xff] %vm2082, %v2093
    %2096 = vst.msk [vmem:[#allocation4 + $0x8] sm:$0xff] %vm2082, %v2094
    %v2105 = vcombine.low %v2070, %v2071
    %v2106 = vcombine.low %v2072, %v2073
    %v2107 = vcombine.low %v2074, %v2075
    %v2108 = vcombine.low %v2076, %v2077
    %v2110 = vunpack.c.l.s4 1966171168
    %v2111 = vunpack.c.0.s8 %v2110
    %v2112 = vlaneseq
    %v2113 = vshrl.u32 %v2112, 7
    %v2114 = vsub.s32 %v2111, %v2113
    %v2115 = vrot.slane %v2105, %v2114
    %v2117 = vunpack.c.l.s4 1966171168
    %v2118 = vunpack.c.0.s8 %v2117
    %v2119 = vlaneseq
    %v2120 = vshrl.u32 %v2119, 7
    %v2121 = vsub.s32 %v2118, %v2120
    %v2122 = vrot.slane %v2106, %v2121
    %v2124 = vunpack.c.l.s4 1966171168
    %v2125 = vunpack.c.0.s8 %v2124
    %v2126 = vlaneseq
    %v2127 = vshrl.u32 %v2126, 7
    %v2128 = vsub.s32 %v2125, %v2127
    %v2129 = vrot.slane %v2107, %v2128
    %v2131 = vunpack.c.l.s4 1966171168
    %v2132 = vunpack.c.0.s8 %v2131
    %v2133 = vlaneseq
    %v2134 = vshrl.u32 %v2133, 7
    %v2135 = vsub.s32 %v2132, %v2134
    %v2136 = vrot.slane %v2108, %v2135
    %v2137 = vcombine.low %v2115, %v2122
    %v2138 = vcombine.low %v2129, %v2136
    %v2140 = vunpack.c.l.s4 1966171168
    %v2141 = vunpack.c.0.s8 %v2140
    %v2142 = vlaneseq
    %v2143 = vshrl.u32 %v2142, 7
    %v2144 = vsub.s32 %v2141, %v2143
    %v2145 = vrot.slane %v2137, %v2144
    %v2147 = vunpack.c.l.s4 1966171168
    %v2148 = vunpack.c.0.s8 %v2147
    %v2149 = vlaneseq
    %v2150 = vshrl.u32 %v2149, 7
    %v2151 = vsub.s32 %v2148, %v2150
    %v2152 = vrot.slane %v2138, %v2151
    %v2153 = vcombine.low %v2145, %v2152
    %2155 = vst [vmem:[#allocation13] sm:$0xff] %v2153
    // Predicated region
    $region38: #{tpu_custom_call.1} parent=1 // pred_check
      %p2156 = pneg %p75
    $region39: #{tpu_custom_call.1} parent=1 // pred_check_branch
      %2158 = sbr.rel (%p2156) target = $region41
    $region40: #{tpu_custom_call.1} parent=1 // pred_region
      %v2159 = vlaneseq
      %v2160 = vshrl.u32 %v2159, 7
      %v2161 = vadd.s32 %v2160, 8
      %v2162 = vlaneseq
      %v2163 = vand.u32 %v2162, 127
      %vm2164 = vcmp.eq.s32.totalorder %v2160, %v2163
      %vm2165 = vcmp.eq.s32.totalorder %v2161, %v2163
      %v2166 = vld [vmem:[#allocation3] sm:$0xff]
      %v2167 = vld [vmem:[#allocation3 + $0x8] sm:$0xff]
      %v2168 = vsel %vm2164, %v2166, 0.0
      %v2169 = vsel %vm2165, %v2167, 0.0
      %v2170 = vsel %vm2082, %v2168, 0.0
      %2171 = vadd.xlane.f32.xlu0 %v2170
      %v2172 = vpop.xlane.xlu0 %2171
      %v2173 = vsel %vm2082, %v2169, 0.0
      %2174 = vadd.xlane.f32.xlu0 %v2173
      %v2175 = vpop.xlane.xlu0 %2174
      %v2176 = vld [vmem:[#allocation4] sm:$0xff]
      %v2177 = vld [vmem:[#allocation4 + $0x8] sm:$0xff]
      %v2178 = vsel %vm2164, %v2176, 0.0
      %v2179 = vsel %vm2165, %v2177, 0.0
      %v2180 = vsel %vm2082, %v2178, 0.0
      %v2181 = vsel %vm2082, %v2179, 0.0
      %v2182 = vadd.f32 %v2180, %v2181
      %v2183 = vrot.slane %v2182, 4
      %v2184 = vadd.f32 %v2182, %v2183
      %v2185 = vrot.slane %v2184, 2
      %v2186 = vadd.f32 %v2184, %v2185
      %v2187 = vrot.slane %v2186, 1
      %v2188 = vadd.f32 %v2186, %v2187
      %v2189 = vmax.f32 %v2172, 1e-24
      %v2190 = vmax.f32 %v2175, 1e-24
      %v2191 = vrsqrt.pop %v2189
      %v2192 = vrsqrt.pop %v2190
      %v2193 = vmul.f32 %v2191, 14.285714
      %v2194 = vmul.f32 %v2192, 14.285714
      %v2195 = vmax.f32 %v2188, 1e-24
      %v2196 = vrsqrt.pop %v2195
      %v2197 = vld [vmem:[#allocation2] sm:$0xff]
      %v2198 = vld [vmem:[#allocation2 + $0x8] sm:$0xff]
      %v2199 = vmul.f32 %v2197, %v2193
      %v2200 = vmul.f32 %v2198, %v2194
      %v2201 = vmul.f32 %v2199, %v2196
      %v2202 = vmul.f32 %v2200, %v2196
      %s2203 = smul.u32 0, 16
      %v2204 = vstv %s2203
      %v2205 = vadd.s32 %v2160, %v2204
      %v2206 = vadd.s32 %v2161, %v2204
      %vm2207 = vcmp.eq.s32.totalorder %v2205, %v2163
      %vm2208 = vcmp.eq.s32.totalorder %v2206, %v2163
      %v2209 = vsel %vm2207, %v2201, 0.0
      %v2210 = vsel %vm2208, %v2202, 0.0
      %v2211 = vsel %vm2082, %v2209, 0.0
      %2212 = vadd.xlane.f32.xlu0 %v2211
      %v2213 = vpop.xlane.xlu0 %2212
      %v2214 = vsel %vm2082, %v2210, 0.0
      %2215 = vadd.xlane.f32.xlu0 %v2214
      %v2216 = vpop.xlane.xlu0 %2215
      %v2217 = vsel %vm2082, %v2201, -inf
      %2218 = vmax.xlane.f32.xlu0 %v2217
      %v2219 = vpop.xlane.xlu0 %2218
      %v2220 = vsel %vm2082, %v2202, -inf
      %2221 = vmax.xlane.f32.xlu0 %v2220
      %v2222 = vpop.xlane.xlu0 %2221
      %v2223 = vsub.f32 %v2201, %v2219
      %v2224 = vsub.f32 %v2202, %v2222
      %v2225 = vmul.f32 %v2223, 1.442695
      %v2226 = vpow.pop %v2225
      %v2227 = vmul.f32 %v2224, 1.442695
      %v2228 = vpow.pop %v2227
      %v2229 = vsel %vm2082, %v2226, 0.0
      %2230 = vadd.xlane.f32.xlu0 %v2229
      %v2231 = vpop.xlane.xlu0 %2230
      %v2232 = vsel %vm2082, %v2228, 0.0
      %2233 = vadd.xlane.f32.xlu0 %v2232
      %v2234 = vpop.xlane.xlu0 %2233
      %v2235 = vlog2.pop %v2231
      %v2236 = vmul.f32 %v2235, 0.6931472
      %v2237 = vlog2.pop %v2234
      %v2238 = vmul.f32 %v2237, 0.6931472
      %v2239 = vadd.f32 %v2236, %v2219
      %v2240 = vadd.f32 %v2238, %v2222
      %v2241 = vsub.f32 %v2239, %v2213
      %v2242 = vsub.f32 %v2240, %v2216
      %vm2243 = vcmask 7168
      %2244 = vst.msk [vmem:[%s4] sm:$0xff] %vm2243, %v2241
      %2245 = vst.msk [vmem:[%s4 + $0x8] sm:$0xff] %vm2243, %v2242
    $region41: #{tpu_custom_call.1} parent=1 // pred_fallthru
      _
    // Predicated region
    $region42: #{tpu_custom_call.1} parent=1 // pred_check
      _
    $region43: #{tpu_custom_call.1} parent=1 // pred_check_branch
      %2247 = sbr.rel (0) target = $region45
    $region44: #{tpu_custom_call.1} parent=1 // pred_region
      _
    $region45: #{tpu_custom_call.1} parent=1 // pred_fallthru
      _
    // Predicated region
    $region46: #{tpu_custom_call.1} parent=1 // pred_check
      _
    $region47: #{tpu_custom_call.1} parent=1 // pred_check_branch
      %2249 = sbr.rel (0) target = $region49
    $region48: #{tpu_custom_call.1} parent=1 // pred_region
      %s2251 = ssub.s32 128, 128
      %2252 = vsyncadd [#allocation7], %s2251
      %s2254 = sshll.u32 [#allocation13], 4
      %s2255 = int_to_ptr.vmem [resolvable:$true] %s2254
      %2257 = dma.vmem_to_hbm [thread:$0]  %s2255, 128, %s5, [#allocation7]
    $region49: #{tpu_custom_call.1} parent=1 // pred_fallthru
      _
    // Predicated region
    $region50: #{tpu_custom_call.1} parent=1 // pred_check
      _
    $region51: #{tpu_custom_call.1} parent=1 // pred_check_branch
      %2259 = sbr.rel (0) target = $region53
    $region52: #{tpu_custom_call.1} parent=1 // pred_region
      _
    $region53: #{tpu_custom_call.1} parent=1 // pred_fallthru
      _
    // Predicated region
    $region54: #{tpu_custom_call.1} parent=1 // pred_check
      _
    $region55: #{tpu_custom_call.1} parent=1 // pred_check_branch
      %2261 = sbr.rel (0) target = $region57
    $region56: #{tpu_custom_call.1} parent=1 // pred_region
      %2262 = dma.done [#allocation7], 128
    $region57: #{tpu_custom_call.1} parent=1 // pred_fallthru
      _
    %2263 = vsyncpa [#allocation6], 1
    %2264 = vsyncpa [#allocation9], 1
    %2265 = vsyncpa [#allocation12], 1
    %2266 = vsyncpa [#allocation7], 1

</llo_original>
